<compile_context>
chip_gen: v5e
topology: v5e:2x2
jax: 0.10.0
libtpu: 0.0.40
codegen_flags: <defaults>
</compile_context>

<pallas_src>
import functools
import jax
import jax.numpy as jnp
from jax.experimental import pallas as pl
from jax.experimental.pallas import tpu as pltpu

# --- tiny-BERT config (small shapes for the demo) ---
VOCAB = 100
MAX_POS = 64
TYPE_VOCAB = 2
HIDDEN = 32
HEADS = 2
HEAD_DIM = HIDDEN // HEADS
INTER = 64
LAYERS = 2
LABELS = 2
EPS = 1e-12


# ---------------- in-kernel helpers (pure functions on values) ----------------

def _layer_norm(x, g, b):
    mu = jnp.mean(x, axis=-1, keepdims=True)
    xc = x - mu
    var = jnp.mean(xc * xc, axis=-1, keepdims=True)
    return xc * jax.lax.rsqrt(var + EPS) * g + b


def _gelu(y):
    # TODO(synk): HF BERT uses exact erf-GELU; tanh-approx GELU used here for
    # guaranteed Mosaic lowering (numerically very close).
    c = jnp.float32(0.7978845608028654)  # sqrt(2/pi)
    return 0.5 * y * (1.0 + jnp.tanh(c * (y + 0.044715 * y * y * y)))


def _bf16(x):
    return x.astype(jnp.bfloat16)


# ---------------- fused encoder kernel (one grid step = one layer) ----------------

def _encoder_kernel(emb_ref, mask_ref, emb_g_ref, emb_b_ref,
                    wqkv_ref, bqkv_ref, wo_ref, bo_ref,
                    ln1_g_ref, ln1_b_ref, w1_ref, b1_ref,
                    w2_ref, b2_ref, ln2_g_ref, ln2_b_ref,
                    o_ref, h_s, *, batch, seq):
    l = pl.program_id(0)

    # Embedding LayerNorm fused into the first grid step (no zero residual).
    @pl.when(l == 0)
    def _():
        h_s[...] = _layer_norm(emb_ref[...], emb_g_ref[...], emb_b_ref[...])

    h = h_s[...]                                                   # [B*S, H] f32

    # --- fused QKV projection: one [B*S, 3H] GEMM instead of three [B*S, H] ---
    qkv = jnp.dot(_bf16(h), wqkv_ref[0],
                  preferred_element_type=jnp.float32) + bqkv_ref[0]  # [B*S, 3H]

    # --- attention for all (batch, head) pairs inside this kernel ---
    mask = mask_ref[...]                                           # [B, 1, S]
    scale = jnp.float32(1.0 / float(HEAD_DIM) ** 0.5)
    wo = wo_ref[0]                                                 # [H, H] bf16

    # Head merge is fused into the output projection:
    #   concat_h(ctx_h) @ Wo == sum_h ctx_h @ Wo[h*D:(h+1)*D, :]
    attn_out = bo_ref[0]                                           # [1, H] f32 (broadcasts)
    for hd in range(HEADS):
        lo = hd * HEAD_DIM
        q3 = qkv[:, lo:lo + HEAD_DIM].reshape(batch, seq, HEAD_DIM)
        k3 = qkv[:, HIDDEN + lo:HIDDEN + lo + HEAD_DIM].reshape(batch, seq, HEAD_DIM)
        v3 = qkv[:, 2 * HIDDEN + lo:2 * HIDDEN + lo + HEAD_DIM].reshape(batch, seq, HEAD_DIM)

        s = jnp.einsum("bqd,bkd->bqk", _bf16(q3), _bf16(k3),
                       preferred_element_type=jnp.float32) * scale + mask   # [B, S, S]
        s = s - jnp.max(s, axis=-1, keepdims=True)
        p = jnp.exp(s)
        p = p * pl.reciprocal(jnp.sum(p, axis=-1, keepdims=True), approx=True)
        c3 = jnp.einsum("bqk,bkd->bqd", _bf16(p), _bf16(v3),
                        preferred_element_type=jnp.float32)                 # [B, S, D]
        ctx_h = c3.reshape(batch * seq, HEAD_DIM)                           # [B*S, D]
        attn_out = attn_out + jnp.dot(_bf16(ctx_h), wo[lo:lo + HEAD_DIM, :],
                                      preferred_element_type=jnp.float32)

    h = _layer_norm(attn_out + h, ln1_g_ref[0], ln1_b_ref[0])      # post-attn LN

    # --- FFN ---
    ffn = jnp.dot(_bf16(h), w1_ref[0],
                  preferred_element_type=jnp.float32) + b1_ref[0]
    ffn = _gelu(ffn)
    ffn = jnp.dot(_bf16(ffn), w2_ref[0],
                  preferred_element_type=jnp.float32) + b2_ref[0]
    h = _layer_norm(ffn + h, ln2_g_ref[0], ln2_b_ref[0])           # post-FFN LN

    h_s[...] = h        # carry to next layer (stays in VMEM)
    o_ref[...] = h      # resident output block; final write lands in HBM


# ---------------- fused pooler + classifier kernel ----------------

def _pooler_kernel(cls_ref, wp_ref, bp_ref, wc_ref, bc_ref, o_ref):
    pooled = jnp.tanh(jnp.dot(_bf16(cls_ref[...]), wp_ref[...],
                              preferred_element_type=jnp.float32) + bp_ref[...])
    o_ref[...] = (jnp.dot(_bf16(pooled), wc_ref[...],
                          preferred_element_type=jnp.float32) + bc_ref[...])


# ---------------- parameters ----------------

def init_params(key):
    keys = iter(jax.random.split(key, 32))
    nrm = lambda shape: 0.02 * jax.random.normal(next(keys), shape, dtype=jnp.float32)

    params = {
        "word_emb": nrm((VOCAB, HIDDEN)),
        "pos_emb": nrm((MAX_POS, HIDDEN)),
        "type_emb": nrm((TYPE_VOCAB, HIDDEN)),
        "emb_ln_g": jnp.ones((1, HIDDEN), jnp.float32),
        "emb_ln_b": jnp.zeros((1, HIDDEN), jnp.float32),
    }

    wqkv, wo, w1, w2 = [], [], [], []
    for _ in range(LAYERS):
        wq, wk, wv = nrm((HIDDEN, HIDDEN)), nrm((HIDDEN, HIDDEN)), nrm((HIDDEN, HIDDEN))
        wqkv.append(jnp.concatenate([wq, wk, wv], axis=1))   # fused QKV weight
        wo.append(nrm((HIDDEN, HIDDEN)))
        w1.append(nrm((HIDDEN, INTER)))
        w2.append(nrm((INTER, HIDDEN)))

    # Matmul weights stored bf16 (MXU operands); biases / LN params stay f32.
    params["wqkv"] = jnp.stack(wqkv).astype(jnp.bfloat16)               # [L, H, 3H]
    params["bqkv"] = jnp.zeros((LAYERS, 1, 3 * HIDDEN), jnp.float32)
    params["wo"] = jnp.stack(wo).astype(jnp.bfloat16)                   # [L, H, H]
    params["bo"] = jnp.zeros((LAYERS, 1, HIDDEN), jnp.float32)
    params["ln1_g"] = jnp.ones((LAYERS, 1, HIDDEN), jnp.float32)
    params["ln1_b"] = jnp.zeros((LAYERS, 1, HIDDEN), jnp.float32)
    params["w1"] = jnp.stack(w1).astype(jnp.bfloat16)                   # [L, H, I]
    params["b1"] = jnp.zeros((LAYERS, 1, INTER), jnp.float32)
    params["w2"] = jnp.stack(w2).astype(jnp.bfloat16)                   # [L, I, H]
    params["b2"] = jnp.zeros((LAYERS, 1, HIDDEN), jnp.float32)
    params["ln2_g"] = jnp.ones((LAYERS, 1, HIDDEN), jnp.float32)
    params["ln2_b"] = jnp.zeros((LAYERS, 1, HIDDEN), jnp.float32)
    params["wp"] = nrm((HIDDEN, HIDDEN)).astype(jnp.bfloat16)
    params["bp"] = jnp.zeros((1, HIDDEN), jnp.float32)
    params["wc"] = nrm((HIDDEN, LABELS)).astype(jnp.bfloat16)
    params["bc"] = jnp.zeros((1, LABELS), jnp.float32)
    return params


# ---------------- forward (BertWrapper semantics) ----------------

def bert_wrapper_forward(params, x):
    # x: int32 [B, S, 3]
    input_ids = x[:, :, 0]
    attention_mask = x[:, :, 1]
    token_type_ids = x[:, :, 2]
    B, S = input_ids.shape
    BS = B * S

    # TODO(synk): embedding gather kept in plain JAX; could move in-kernel via
    # PrefetchScalarGridSpec with the (tiny) tables resident in VMEM.
    emb = (params["word_emb"][input_ids]
           + params["pos_emb"][:S][None, :, :]
           + params["type_emb"][token_type_ids]).reshape(BS, HIDDEN).astype(jnp.float32)

    # Additive attention mask, applied over the key axis: [B, 1, S].
    mask_add = ((1.0 - attention_mask.astype(jnp.float32)) * -10000.0).reshape(B, 1, S)

    def full_spec(arr):
        zeros = (0,) * arr.ndim
        return pl.BlockSpec(arr.shape, lambda l, _z=zeros: _z)

    def layer_spec(arr):
        return pl.BlockSpec((1,) + arr.shape[1:], lambda l: (l, 0, 0))

    encoder = pl.pallas_call(
        functools.partial(_encoder_kernel, batch=B, seq=S),
        grid=(LAYERS,),
        out_shape=jax.ShapeDtypeStruct((BS, HIDDEN), jnp.float32),
        in_specs=[
            full_spec(emb),
            full_spec(mask_add),
            full_spec(params["emb_ln_g"]),
            full_spec(params["emb_ln_b"]),
            layer_spec(params["wqkv"]),
            layer_spec(params["bqkv"]),
            layer_spec(params["wo"]),
            layer_spec(params["bo"]),
            layer_spec(params["ln1_g"]),
            layer_spec(params["ln1_b"]),
            layer_spec(params["w1"]),
            layer_spec(params["b1"]),
            layer_spec(params["w2"]),
            layer_spec(params["b2"]),
            layer_spec(params["ln2_g"]),
            layer_spec(params["ln2_b"]),
        ],
        out_specs=pl.BlockSpec((BS, HIDDEN), lambda l: (0, 0)),
        scratch_shapes=[pltpu.VMEM((BS, HIDDEN), jnp.float32)],
        compiler_params=pltpu.CompilerParams(dimension_semantics=("arbitrary",)),
    )
    h_out = encoder(emb, mask_add, params["emb_ln_g"], params["emb_ln_b"],
                    params["wqkv"], params["bqkv"], params["wo"], params["bo"],
                    params["ln1_g"], params["ln1_b"], params["w1"], params["b1"],
                    params["w2"], params["b2"], params["ln2_g"], params["ln2_b"])

    # CLS token per batch element (plain-JAX glue), then fused pooler+classifier.
    cls_tok = h_out.reshape(B, S, HIDDEN)[:, 0, :]                  # [B, H]
    logits = pl.pallas_call(
        _pooler_kernel,
        grid=(1,),
        out_shape=jax.ShapeDtypeStruct((B, LABELS), jnp.float32),
        in_specs=[
            pl.BlockSpec((B, HIDDEN), lambda i: (0, 0)),
            pl.BlockSpec((HIDDEN, HIDDEN), lambda i: (0, 0)),
            pl.BlockSpec((1, HIDDEN), lambda i: (0, 0)),
            pl.BlockSpec((HIDDEN, LABELS), lambda i: (0, 0)),
            pl.BlockSpec((1, LABELS), lambda i: (0, 0)),
        ],
        out_specs=pl.BlockSpec((B, LABELS), lambda i: (0, 0)),
    )(cls_tok, params["wp"], params["bp"], params["wc"], params["bc"])

    return logits                                                   # [B, LABELS]


# ---------------- main ----------------

if __name__ == "__main__":
    key = jax.random.PRNGKey(0)
    pkey, ikey, tkey = jax.random.split(key, 3)
    params = init_params(pkey)

    B, S = 2, 8
    input_ids = jax.random.randint(ikey, (B, S), 0, VOCAB, dtype=jnp.int32)
    attention_mask = jnp.array([[1] * S, [1] * (S - 2) + [0] * 2], dtype=jnp.int32)
    token_type_ids = jax.random.randint(tkey, (B, S), 0, TYPE_VOCAB, dtype=jnp.int32)
    x = jnp.stack([input_ids, attention_mask, token_type_ids], axis=-1)  # [2, 8, 3]

    logits = jax.jit(bert_wrapper_forward)(params, x)
    logits = jax.block_until_ready(logits)
    assert logits.shape == (B, LABELS) and logits.dtype == jnp.float32
    print("KERNEL_OK")
</pallas_src>

<mosaic_0001>
module attributes {stable_mosaic.version = 11 : i64} {
  func.func @_encoder_kernel(%arg0: i32, %arg1: memref<16x32xf32, #tpu.memory_space<vmem>>, %arg2: memref<2x1x8xf32, #tpu.memory_space<vmem>>, %arg3: memref<1x32xf32, #tpu.memory_space<vmem>>, %arg4: memref<1x32xf32, #tpu.memory_space<vmem>>, %arg5: memref<1x32x96xbf16, #tpu.memory_space<vmem>>, %arg6: memref<1x1x96xf32, #tpu.memory_space<vmem>>, %arg7: memref<1x32x32xbf16, #tpu.memory_space<vmem>>, %arg8: memref<1x1x32xf32, #tpu.memory_space<vmem>>, %arg9: memref<1x1x32xf32, #tpu.memory_space<vmem>>, %arg10: memref<1x1x32xf32, #tpu.memory_space<vmem>>, %arg11: memref<1x32x64xbf16, #tpu.memory_space<vmem>>, %arg12: memref<1x1x64xf32, #tpu.memory_space<vmem>>, %arg13: memref<1x64x32xbf16, #tpu.memory_space<vmem>>, %arg14: memref<1x1x32xf32, #tpu.memory_space<vmem>>, %arg15: memref<1x1x32xf32, #tpu.memory_space<vmem>>, %arg16: memref<1x1x32xf32, #tpu.memory_space<vmem>>, %arg17: memref<16x32xf32, #tpu.memory_space<vmem>>, %arg18: memref<16x32xf32, #tpu.memory_space<vmem>>) attributes {dimension_semantics = [#tpu.dimension_semantics<arbitrary>], iteration_bounds = array<i64: 2>, scalar_prefetch = 0 : i64, scratch_operands = 1 : i64, tpu.core_type = #tpu.core_type<tc>, window_params = [{pipeline_mode = #tpu.pipeline_mode<synchronous>, transform_indices = @transform_0, window_bounds = array<i64: 16, 32>}, {pipeline_mode = #tpu.pipeline_mode<synchronous>, transform_indices = @transform_1, window_bounds = array<i64: 2, 1, 8>}, {pipeline_mode = #tpu.pipeline_mode<synchronous>, transform_indices = @transform_2, window_bounds = array<i64: 1, 32>}, {pipeline_mode = #tpu.pipeline_mode<synchronous>, transform_indices = @transform_3, window_bounds = array<i64: 1, 32>}, {transform_indices = @transform_4, window_bounds = array<i64: 1, 32, 96>}, {transform_indices = @transform_5, window_bounds = array<i64: 1, 1, 96>}, {transform_indices = @transform_6, window_bounds = array<i64: 1, 32, 32>}, {transform_indices = @transform_7, window_bounds = array<i64: 1, 1, 32>}, {transform_indices = @transform_8, window_bounds = array<i64: 1, 1, 32>}, {transform_indices = @transform_9, window_bounds = array<i64: 1, 1, 32>}, {transform_indices = @transform_10, window_bounds = array<i64: 1, 32, 64>}, {transform_indices = @transform_11, window_bounds = array<i64: 1, 1, 64>}, {transform_indices = @transform_12, window_bounds = array<i64: 1, 64, 32>}, {transform_indices = @transform_13, window_bounds = array<i64: 1, 1, 32>}, {transform_indices = @transform_14, window_bounds = array<i64: 1, 1, 32>}, {transform_indices = @transform_15, window_bounds = array<i64: 1, 1, 32>}, {pipeline_mode = #tpu.pipeline_mode<synchronous>, transform_indices = @transform_16, window_bounds = array<i64: 16, 32>}]} {
    %c0_i32 = arith.constant 0 : i32
    %0 = arith.cmpi eq, %arg0, %c0_i32 : i32
    %1 = arith.extui %0 : i1 to i32
    %c0_i32_0 = arith.constant 0 : i32
    %2 = arith.cmpi ne, %1, %c0_i32_0 : i32
    scf.if %2 {
      %c0_73 = arith.constant 0 : index
      %c0_74 = arith.constant 0 : index
      %161 = vector.load %arg1[%c0_73, %c0_74] : memref<16x32xf32, #tpu.memory_space<vmem>>, vector<16x32xf32>
      %c0_75 = arith.constant 0 : index
      %c0_76 = arith.constant 0 : index
      %162 = vector.load %arg3[%c0_75, %c0_76] : memref<1x32xf32, #tpu.memory_space<vmem>>, vector<1x32xf32>
      %c0_77 = arith.constant 0 : index
      %c0_78 = arith.constant 0 : index
      %163 = vector.load %arg4[%c0_77, %c0_78] : memref<1x32xf32, #tpu.memory_space<vmem>>, vector<1x32xf32>
      %cst_79 = arith.constant dense<0.000000e+00> : vector<16xf32>
      %164 = vector.multi_reduction <add>, %161, %cst_79 [1] : vector<16x32xf32> to vector<16xf32>
      %165 = vector.shape_cast %164 : vector<16xf32> to vector<16x1xf32>
      %cst_80 = arith.constant 3.200000e+01 : f32
      %166 = vector.broadcast %cst_80 : f32 to vector<16x1xf32>
      %167 = arith.divf %165, %166 : vector<16x1xf32>
      %168 = vector.broadcast %167 : vector<16x1xf32> to vector<16x32xf32>
      %169 = arith.subf %161, %168 : vector<16x32xf32>
      %170 = arith.mulf %169, %169 : vector<16x32xf32>
      %cst_81 = arith.constant dense<0.000000e+00> : vector<16xf32>
      %171 = vector.multi_reduction <add>, %170, %cst_81 [1] : vector<16x32xf32> to vector<16xf32>
      %172 = vector.shape_cast %171 : vector<16xf32> to vector<16x1xf32>
      %cst_82 = arith.constant 3.200000e+01 : f32
      %173 = vector.broadcast %cst_82 : f32 to vector<16x1xf32>
      %174 = arith.divf %172, %173 : vector<16x1xf32>
      %cst_83 = arith.constant 9.99999996E-13 : f32
      %175 = vector.broadcast %cst_83 : f32 to vector<16x1xf32>
      %176 = arith.addf %174, %175 : vector<16x1xf32>
      %177 = math.rsqrt %176 : vector<16x1xf32>
      %178 = vector.broadcast %177 : vector<16x1xf32> to vector<16x32xf32>
      %179 = arith.mulf %169, %178 : vector<16x32xf32>
      %180 = vector.broadcast %162 : vector<1x32xf32> to vector<16x32xf32>
      %181 = arith.mulf %179, %180 : vector<16x32xf32>
      %182 = vector.broadcast %163 : vector<1x32xf32> to vector<16x32xf32>
      %183 = arith.addf %181, %182 : vector<16x32xf32>
      %c0_84 = arith.constant 0 : index
      %c0_85 = arith.constant 0 : index
      %184 = vector.load %arg18[%c0_84, %c0_85] : memref<16x32xf32, #tpu.memory_space<vmem>>, vector<16x32xf32>
      tpu.vector_store %arg18[%c0_84, %c0_85], %183 {strides = array<i32>} : memref<16x32xf32, #tpu.memory_space<vmem>>, vector<16x32xf32>,
    } else {
    }
    %c0 = arith.constant 0 : index
    %c0_1 = arith.constant 0 : index
    %3 = vector.load %arg18[%c0, %c0_1] : memref<16x32xf32, #tpu.memory_space<vmem>>, vector<16x32xf32>
    %4 = arith.truncf %3 : vector<16x32xf32> to vector<16x32xbf16>
    %c0_2 = arith.constant 0 : index
    %c0_3 = arith.constant 0 : index
    %c0_4 = arith.constant 0 : index
    %5 = vector.load %arg5[%c0_2, %c0_3, %c0_4] : memref<1x32x96xbf16, #tpu.memory_space<vmem>>, vector<1x32x96xbf16>
    %6 = vector.shape_cast %5 : vector<1x32x96xbf16> to vector<32x96xbf16>
    %cst = arith.constant dense<0.000000e+00> : vector<16x96xf32>
    %7 = tpu.matmul %4, %6, %cst {dimension_numbers = #tpu.dot_dimension_numbers<[1], [0], [0], [1], [0, 0, 1, 1], [], []>} : vector<16x32xbf16>, vector<32x96xbf16>, vector<16x96xf32> -> vector<16x96xf32>
    %c0_5 = arith.constant 0 : index
    %c0_6 = arith.constant 0 : index
    %c0_7 = arith.constant 0 : index
    %8 = vector.load %arg6[%c0_5, %c0_6, %c0_7] : memref<1x1x96xf32, #tpu.memory_space<vmem>>, vector<1x1x96xf32>
    %9 = vector.shape_cast %8 : vector<1x1x96xf32> to vector<1x96xf32>
    %10 = vector.broadcast %9 : vector<1x96xf32> to vector<16x96xf32>
    %11 = arith.addf %7, %10 : vector<16x96xf32>
    %c0_8 = arith.constant 0 : index
    %c0_9 = arith.constant 0 : index
    %c0_10 = arith.constant 0 : index
    %12 = vector.load %arg2[%c0_8, %c0_9, %c0_10] : memref<2x1x8xf32, #tpu.memory_space<vmem>>, vector<2x1x8xf32>
    %c0_11 = arith.constant 0 : index
    %c0_12 = arith.constant 0 : index
    %c0_13 = arith.constant 0 : index
    %13 = vector.load %arg7[%c0_11, %c0_12, %c0_13] : memref<1x32x32xbf16, #tpu.memory_space<vmem>>, vector<1x32x32xbf16>
    %14 = vector.shape_cast %13 : vector<1x32x32xbf16> to vector<32x32xbf16>
    %c0_14 = arith.constant 0 : index
    %c0_15 = arith.constant 0 : index
    %c0_16 = arith.constant 0 : index
    %15 = vector.load %arg8[%c0_14, %c0_15, %c0_16] : memref<1x1x32xf32, #tpu.memory_space<vmem>>, vector<1x1x32xf32>
    %16 = vector.shape_cast %15 : vector<1x1x32xf32> to vector<1x32xf32>
    %17 = vector.extract_strided_slice %11 {offsets = [0, 0], sizes = [16, 16], strides = [1, 1]} : vector<16x96xf32> to vector<16x16xf32>
    %18 = vector.shape_cast %17 : vector<16x16xf32> to vector<2x8x16xf32>
    %19 = vector.extract_strided_slice %11 {offsets = [0, 32], sizes = [16, 16], strides = [1, 1]} : vector<16x96xf32> to vector<16x16xf32>
    %20 = vector.shape_cast %19 : vector<16x16xf32> to vector<2x8x16xf32>
    %21 = vector.extract_strided_slice %11 {offsets = [0, 64], sizes = [16, 16], strides = [1, 1]} : vector<16x96xf32> to vector<16x16xf32>
    %22 = vector.shape_cast %21 : vector<16x16xf32> to vector<2x8x16xf32>
    %23 = arith.truncf %18 : vector<2x8x16xf32> to vector<2x8x16xbf16>
    %24 = arith.truncf %20 : vector<2x8x16xf32> to vector<2x8x16xbf16>
    "tpu.trace_start"() <{level = 10 : i32, message = "bqd,bkd->bqk"}> : () -> ()
    %cst_17 = arith.constant dense<0.000000e+00> : vector<2x8x8xf32>
    %25 = tpu.matmul %23, %24, %cst_17 {dimension_numbers = #tpu.dot_dimension_numbers<[2], [2], [1], [1], [0, 0, 0, 1, 1, 1], [0], [0]>} : vector<2x8x16xbf16>, vector<2x8x16xbf16>, vector<2x8x8xf32> -> vector<2x8x8xf32>
    "tpu.trace_stop"() : () -> ()
    %cst_18 = arith.constant 2.500000e-01 : f32
    %26 = vector.broadcast %cst_18 : f32 to vector<2x8x8xf32>
    %27 = arith.mulf %25, %26 : vector<2x8x8xf32>
    %28 = vector.broadcast %12 : vector<2x1x8xf32> to vector<2x8x8xf32>
    %29 = arith.addf %27, %28 : vector<2x8x8xf32>
    %cst_19 = arith.constant dense<0xFF800000> : vector<2x8xf32>
    %30 = vector.multi_reduction <maximumf>, %29, %cst_19 [2] : vector<2x8x8xf32> to vector<2x8xf32>
    %31 = vector.shape_cast %30 : vector<2x8xf32> to vector<2x8x1xf32>
    %32 = vector.broadcast %31 : vector<2x8x1xf32> to vector<2x8x8xf32>
    %33 = arith.subf %29, %32 : vector<2x8x8xf32>
    %34 = math.exp %33 : vector<2x8x8xf32>
    %cst_20 = arith.constant dense<0.000000e+00> : vector<2x8xf32>
    %35 = vector.multi_reduction <add>, %34, %cst_20 [2] : vector<2x8x8xf32> to vector<2x8xf32>
    %36 = vector.shape_cast %35 : vector<2x8xf32> to vector<2x8x1xf32>
    %37 = tpu.reciprocal %36 {approx = true} : vector<2x8x1xf32> -> vector<2x8x1xf32>
    %38 = vector.broadcast %37 : vector<2x8x1xf32> to vector<2x8x8xf32>
    %39 = arith.mulf %34, %38 : vector<2x8x8xf32>
    %40 = arith.truncf %39 : vector<2x8x8xf32> to vector<2x8x8xbf16>
    %41 = arith.truncf %22 : vector<2x8x16xf32> to vector<2x8x16xbf16>
    "tpu.trace_start"() <{level = 10 : i32, message = "bqk,bkd->bqd"}> : () -> ()
    %cst_21 = arith.constant dense<0.000000e+00> : vector<2x8x16xf32>
    %42 = tpu.matmul %40, %41, %cst_21 {dimension_numbers = #tpu.dot_dimension_numbers<[2], [1], [1], [2], [0, 0, 0, 1, 1, 2], [0], [0]>} : vector<2x8x8xbf16>, vector<2x8x16xbf16>, vector<2x8x16xf32> -> vector<2x8x16xf32>
    "tpu.trace_stop"() : () -> ()
    %43 = vector.shape_cast %42 : vector<2x8x16xf32> to vector<16x16xf32>
    %44 = arith.truncf %43 : vector<16x16xf32> to vector<16x16xbf16>
    %45 = vector.extract_strided_slice %14 {offsets = [0, 0], sizes = [16, 32], strides = [1, 1]} : vector<32x32xbf16> to vector<16x32xbf16>
    %cst_22 = arith.constant dense<0.000000e+00> : vector<16x32xf32>
    %46 = tpu.matmul %44, %45, %cst_22 {dimension_numbers = #tpu.dot_dimension_numbers<[1], [0], [0], [1], [0, 0, 1, 1], [], []>} : vector<16x16xbf16>, vector<16x32xbf16>, vector<16x32xf32> -> vector<16x32xf32>
    %47 = vector.broadcast %16 : vector<1x32xf32> to vector<16x32xf32>
    %48 = arith.addf %47, %46 : vector<16x32xf32>
    %49 = vector.extract_strided_slice %11 {offsets = [0, 16], sizes = [16, 16], strides = [1, 1]} : vector<16x96xf32> to vector<16x16xf32>
    %50 = vector.shape_cast %49 : vector<16x16xf32> to vector<2x8x16xf32>
    %51 = vector.extract_strided_slice %11 {offsets = [0, 48], sizes = [16, 16], strides = [1, 1]} : vector<16x96xf32> to vector<16x16xf32>
    %52 = vector.shape_cast %51 : vector<16x16xf32> to vector<2x8x16xf32>
    %53 = vector.extract_strided_slice %11 {offsets = [0, 80], sizes = [16, 16], strides = [1, 1]} : vector<16x96xf32> to vector<16x16xf32>
    %54 = vector.shape_cast %53 : vector<16x16xf32> to vector<2x8x16xf32>
    %55 = arith.truncf %50 : vector<2x8x16xf32> to vector<2x8x16xbf16>
    %56 = arith.truncf %52 : vector<2x8x16xf32> to vector<2x8x16xbf16>
    "tpu.trace_start"() <{level = 10 : i32, message = "bqd,bkd->bqk"}> : () -> ()
    %cst_23 = arith.constant dense<0.000000e+00> : vector<2x8x8xf32>
    %57 = tpu.matmul %55, %56, %cst_23 {dimension_numbers = #tpu.dot_dimension_numbers<[2], [2], [1], [1], [0, 0, 0, 1, 1, 1], [0], [0]>} : vector<2x8x16xbf16>, vector<2x8x16xbf16>, vector<2x8x8xf32> -> vector<2x8x8xf32>
    "tpu.trace_stop"() : () -> ()
    %cst_24 = arith.constant 2.500000e-01 : f32
    %58 = vector.broadcast %cst_24 : f32 to vector<2x8x8xf32>
    %59 = arith.mulf %57, %58 : vector<2x8x8xf32>
    %60 = vector.broadcast %12 : vector<2x1x8xf32> to vector<2x8x8xf32>
    %61 = arith.addf %59, %60 : vector<2x8x8xf32>
    %cst_25 = arith.constant dense<0xFF800000> : vector<2x8xf32>
    %62 = vector.multi_reduction <maximumf>, %61, %cst_25 [2] : vector<2x8x8xf32> to vector<2x8xf32>
    %63 = vector.shape_cast %62 : vector<2x8xf32> to vector<2x8x1xf32>
    %64 = vector.broadcast %63 : vector<2x8x1xf32> to vector<2x8x8xf32>
    %65 = arith.subf %61, %64 : vector<2x8x8xf32>
    %66 = math.exp %65 : vector<2x8x8xf32>
    %cst_26 = arith.constant dense<0.000000e+00> : vector<2x8xf32>
    %67 = vector.multi_reduction <add>, %66, %cst_26 [2] : vector<2x8x8xf32> to vector<2x8xf32>
    %68 = vector.shape_cast %67 : vector<2x8xf32> to vector<2x8x1xf32>
    %69 = tpu.reciprocal %68 {approx = true} : vector<2x8x1xf32> -> vector<2x8x1xf32>
    %70 = vector.broadcast %69 : vector<2x8x1xf32> to vector<2x8x8xf32>
    %71 = arith.mulf %66, %70 : vector<2x8x8xf32>
    %72 = arith.truncf %71 : vector<2x8x8xf32> to vector<2x8x8xbf16>
    %73 = arith.truncf %54 : vector<2x8x16xf32> to vector<2x8x16xbf16>
    "tpu.trace_start"() <{level = 10 : i32, message = "bqk,bkd->bqd"}> : () -> ()
    %cst_27 = arith.constant dense<0.000000e+00> : vector<2x8x16xf32>
    %74 = tpu.matmul %72, %73, %cst_27 {dimension_numbers = #tpu.dot_dimension_numbers<[2], [1], [1], [2], [0, 0, 0, 1, 1, 2], [0], [0]>} : vector<2x8x8xbf16>, vector<2x8x16xbf16>, vector<2x8x16xf32> -> vector<2x8x16xf32>
    "tpu.trace_stop"() : () -> ()
    %75 = vector.shape_cast %74 : vector<2x8x16xf32> to vector<16x16xf32>
    %76 = arith.truncf %75 : vector<16x16xf32> to vector<16x16xbf16>
    %77 = vector.extract_strided_slice %14 {offsets = [16, 0], sizes = [16, 32], strides = [1, 1]} : vector<32x32xbf16> to vector<16x32xbf16>
    %cst_28 = arith.constant dense<0.000000e+00> : vector<16x32xf32>
    %78 = tpu.matmul %76, %77, %cst_28 {dimension_numbers = #tpu.dot_dimension_numbers<[1], [0], [0], [1], [0, 0, 1, 1], [], []>} : vector<16x16xbf16>, vector<16x32xbf16>, vector<16x32xf32> -> vector<16x32xf32>
    %79 = arith.addf %48, %78 : vector<16x32xf32>
    %80 = arith.addf %79, %3 : vector<16x32xf32>
    %c0_29 = arith.constant 0 : index
    %c0_30 = arith.constant 0 : index
    %c0_31 = arith.constant 0 : index
    %81 = vector.load %arg9[%c0_29, %c0_30, %c0_31] : memref<1x1x32xf32, #tpu.memory_space<vmem>>, vector<1x1x32xf32>
    %82 = vector.shape_cast %81 : vector<1x1x32xf32> to vector<1x32xf32>
    %c0_32 = arith.constant 0 : index
    %c0_33 = arith.constant 0 : index
    %c0_34 = arith.constant 0 : index
    %83 = vector.load %arg10[%c0_32, %c0_33, %c0_34] : memref<1x1x32xf32, #tpu.memory_space<vmem>>, vector<1x1x32xf32>
    %84 = vector.shape_cast %83 : vector<1x1x32xf32> to vector<1x32xf32>
    %cst_35 = arith.constant dense<0.000000e+00> : vector<16xf32>
    %85 = vector.multi_reduction <add>, %80, %cst_35 [1] : vector<16x32xf32> to vector<16xf32>
    %86 = vector.shape_cast %85 : vector<16xf32> to vector<16x1xf32>
    %cst_36 = arith.constant 3.200000e+01 : f32
    %87 = vector.broadcast %cst_36 : f32 to vector<16x1xf32>
    %88 = arith.divf %86, %87 : vector<16x1xf32>
    %89 = vector.broadcast %88 : vector<16x1xf32> to vector<16x32xf32>
    %90 = arith.subf %80, %89 : vector<16x32xf32>
    %91 = arith.mulf %90, %90 : vector<16x32xf32>
    %cst_37 = arith.constant dense<0.000000e+00> : vector<16xf32>
    %92 = vector.multi_reduction <add>, %91, %cst_37 [1] : vector<16x32xf32> to vector<16xf32>
    %93 = vector.shape_cast %92 : vector<16xf32> to vector<16x1xf32>
    %cst_38 = arith.constant 3.200000e+01 : f32
    %94 = vector.broadcast %cst_38 : f32 to vector<16x1xf32>
    %95 = arith.divf %93, %94 : vector<16x1xf32>
    %cst_39 = arith.constant 9.99999996E-13 : f32
    %96 = vector.broadcast %cst_39 : f32 to vector<16x1xf32>
    %97 = arith.addf %95, %96 : vector<16x1xf32>
    %98 = math.rsqrt %97 : vector<16x1xf32>
    %99 = vector.broadcast %98 : vector<16x1xf32> to vector<16x32xf32>
    %100 = arith.mulf %90, %99 : vector<16x32xf32>
    %101 = vector.broadcast %82 : vector<1x32xf32> to vector<16x32xf32>
    %102 = arith.mulf %100, %101 : vector<16x32xf32>
    %103 = vector.broadcast %84 : vector<1x32xf32> to vector<16x32xf32>
    %104 = arith.addf %102, %103 : vector<16x32xf32>
    %105 = arith.truncf %104 : vector<16x32xf32> to vector<16x32xbf16>
    %c0_40 = arith.constant 0 : index
    %c0_41 = arith.constant 0 : index
    %c0_42 = arith.constant 0 : index
    %106 = vector.load %arg11[%c0_40, %c0_41, %c0_42] : memref<1x32x64xbf16, #tpu.memory_space<vmem>>, vector<1x32x64xbf16>
    %107 = vector.shape_cast %106 : vector<1x32x64xbf16> to vector<32x64xbf16>
    %cst_43 = arith.constant dense<0.000000e+00> : vector<16x64xf32>
    %108 = tpu.matmul %105, %107, %cst_43 {dimension_numbers = #tpu.dot_dimension_numbers<[1], [0], [0], [1], [0, 0, 1, 1], [], []>} : vector<16x32xbf16>, vector<32x64xbf16>, vector<16x64xf32> -> vector<16x64xf32>
    %c0_44 = arith.constant 0 : index
    %c0_45 = arith.constant 0 : index
    %c0_46 = arith.constant 0 : index
    %109 = vector.load %arg12[%c0_44, %c0_45, %c0_46] : memref<1x1x64xf32, #tpu.memory_space<vmem>>, vector<1x1x64xf32>
    %110 = vector.shape_cast %109 : vector<1x1x64xf32> to vector<1x64xf32>
    %111 = vector.broadcast %110 : vector<1x64xf32> to vector<16x64xf32>
    %112 = arith.addf %108, %111 : vector<16x64xf32>
    %cst_47 = arith.constant 5.000000e-01 : f32
    %113 = vector.broadcast %cst_47 : f32 to vector<16x64xf32>
    %114 = arith.mulf %113, %112 : vector<16x64xf32>
    %cst_48 = arith.constant 4.471500e-02 : f32
    %115 = vector.broadcast %cst_48 : f32 to vector<16x64xf32>
    %116 = arith.mulf %115, %112 : vector<16x64xf32>
    %117 = arith.mulf %116, %112 : vector<16x64xf32>
    %118 = arith.mulf %117, %112 : vector<16x64xf32>
    %119 = arith.addf %112, %118 : vector<16x64xf32>
    %cst_49 = arith.constant 0.797884583 : f32
    %120 = vector.broadcast %cst_49 : f32 to vector<16x64xf32>
    %121 = arith.mulf %120, %119 : vector<16x64xf32>
    %122 = math.tanh %121 : vector<16x64xf32>
    %cst_50 = arith.constant 1.000000e+00 : f32
    %123 = vector.broadcast %cst_50 : f32 to vector<16x64xf32>
    %124 = arith.addf %123, %122 : vector<16x64xf32>
    %125 = arith.mulf %114, %124 : vector<16x64xf32>
    %126 = arith.truncf %125 : vector<16x64xf32> to vector<16x64xbf16>
    %c0_51 = arith.constant 0 : index
    %c0_52 = arith.constant 0 : index
    %c0_53 = arith.constant 0 : index
    %127 = vector.load %arg13[%c0_51, %c0_52, %c0_53] : memref<1x64x32xbf16, #tpu.memory_space<vmem>>, vector<1x64x32xbf16>
    %128 = vector.shape_cast %127 : vector<1x64x32xbf16> to vector<64x32xbf16>
    %cst_54 = arith.constant dense<0.000000e+00> : vector<16x32xf32>
    %129 = tpu.matmul %126, %128, %cst_54 {dimension_numbers = #tpu.dot_dimension_numbers<[1], [0], [0], [1], [0, 0, 1, 1], [], []>} : vector<16x64xbf16>, vector<64x32xbf16>, vector<16x32xf32> -> vector<16x32xf32>
    %c0_55 = arith.constant 0 : index
    %c0_56 = arith.constant 0 : index
    %c0_57 = arith.constant 0 : index
    %130 = vector.load %arg14[%c0_55, %c0_56, %c0_57] : memref<1x1x32xf32, #tpu.memory_space<vmem>>, vector<1x1x32xf32>
    %131 = vector.shape_cast %130 : vector<1x1x32xf32> to vector<1x32xf32>
    %132 = vector.broadcast %131 : vector<1x32xf32> to vector<16x32xf32>
    %133 = arith.addf %129, %132 : vector<16x32xf32>
    %134 = arith.addf %133, %104 : vector<16x32xf32>
    %c0_58 = arith.constant 0 : index
    %c0_59 = arith.constant 0 : index
    %c0_60 = arith.constant 0 : index
    %135 = vector.load %arg15[%c0_58, %c0_59, %c0_60] : memref<1x1x32xf32, #tpu.memory_space<vmem>>, vector<1x1x32xf32>
    %136 = vector.shape_cast %135 : vector<1x1x32xf32> to vector<1x32xf32>
    %c0_61 = arith.constant 0 : index
    %c0_62 = arith.constant 0 : index
    %c0_63 = arith.constant 0 : index
    %137 = vector.load %arg16[%c0_61, %c0_62, %c0_63] : memref<1x1x32xf32, #tpu.memory_space<vmem>>, vector<1x1x32xf32>
    %138 = vector.shape_cast %137 : vector<1x1x32xf32> to vector<1x32xf32>
    %cst_64 = arith.constant dense<0.000000e+00> : vector<16xf32>
    %139 = vector.multi_reduction <add>, %134, %cst_64 [1] : vector<16x32xf32> to vector<16xf32>
    %140 = vector.shape_cast %139 : vector<16xf32> to vector<16x1xf32>
    %cst_65 = arith.constant 3.200000e+01 : f32
    %141 = vector.broadcast %cst_65 : f32 to vector<16x1xf32>
    %142 = arith.divf %140, %141 : vector<16x1xf32>
    %143 = vector.broadcast %142 : vector<16x1xf32> to vector<16x32xf32>
    %144 = arith.subf %134, %143 : vector<16x32xf32>
    %145 = arith.mulf %144, %144 : vector<16x32xf32>
    %cst_66 = arith.constant dense<0.000000e+00> : vector<16xf32>
    %146 = vector.multi_reduction <add>, %145, %cst_66 [1] : vector<16x32xf32> to vector<16xf32>
    %147 = vector.shape_cast %146 : vector<16xf32> to vector<16x1xf32>
    %cst_67 = arith.constant 3.200000e+01 : f32
    %148 = vector.broadcast %cst_67 : f32 to vector<16x1xf32>
    %149 = arith.divf %147, %148 : vector<16x1xf32>
    %cst_68 = arith.constant 9.99999996E-13 : f32
    %150 = vector.broadcast %cst_68 : f32 to vector<16x1xf32>
    %151 = arith.addf %149, %150 : vector<16x1xf32>
    %152 = math.rsqrt %151 : vector<16x1xf32>
    %153 = vector.broadcast %152 : vector<16x1xf32> to vector<16x32xf32>
    %154 = arith.mulf %144, %153 : vector<16x32xf32>
    %155 = vector.broadcast %136 : vector<1x32xf32> to vector<16x32xf32>
    %156 = arith.mulf %154, %155 : vector<16x32xf32>
    %157 = vector.broadcast %138 : vector<1x32xf32> to vector<16x32xf32>
    %158 = arith.addf %156, %157 : vector<16x32xf32>
    %c0_69 = arith.constant 0 : index
    %c0_70 = arith.constant 0 : index
    %159 = vector.load %arg18[%c0_69, %c0_70] : memref<16x32xf32, #tpu.memory_space<vmem>>, vector<16x32xf32>
    tpu.vector_store %arg18[%c0_69, %c0_70], %158 {strides = array<i32>} : memref<16x32xf32, #tpu.memory_space<vmem>>, vector<16x32xf32>,
    %c0_71 = arith.constant 0 : index
    %c0_72 = arith.constant 0 : index
    %160 = vector.load %arg17[%c0_71, %c0_72] : memref<16x32xf32, #tpu.memory_space<vmem>>, vector<16x32xf32>
    tpu.vector_store %arg17[%c0_71, %c0_72], %158 {strides = array<i32>} : memref<16x32xf32, #tpu.memory_space<vmem>>, vector<16x32xf32>,
    return
  }
  func.func @transform_0(%arg0: i32) -> (i32, i32) {
    %c0_i32 = arith.constant 0 : i32
    %c0_i32_0 = arith.constant 0 : i32
    %c0_i32_1 = arith.constant 0 : i32
    return %c0_i32, %c0_i32_0 : i32, i32
  }
  func.func @transform_1(%arg0: i32) -> (i32, i32, i32) {
    %c0_i32 = arith.constant 0 : i32
    %c0_i32_0 = arith.constant 0 : i32
    %c0_i32_1 = arith.constant 0 : i32
    %c0_i32_2 = arith.constant 0 : i32
    return %c0_i32, %c0_i32_0, %c0_i32_1 : i32, i32, i32
  }
  func.func @transform_2(%arg0: i32) -> (i32, i32) {
    %c0_i32 = arith.constant 0 : i32
    %c0_i32_0 = arith.constant 0 : i32
    %c0_i32_1 = arith.constant 0 : i32
    return %c0_i32, %c0_i32_0 : i32, i32
  }
  func.func @transform_3(%arg0: i32) -> (i32, i32) {
    %c0_i32 = arith.constant 0 : i32
    %c0_i32_0 = arith.constant 0 : i32
    %c0_i32_1 = arith.constant 0 : i32
    return %c0_i32, %c0_i32_0 : i32, i32
  }
  func.func @transform_4(%arg0: i32) -> (i32, i32, i32) {
    %c0_i32 = arith.constant 0 : i32
    %c0_i32_0 = arith.constant 0 : i32
    %c0_i32_1 = arith.constant 0 : i32
    return %arg0, %c0_i32, %c0_i32_0 : i32, i32, i32
  }
  func.func @transform_5(%arg0: i32) -> (i32, i32, i32) {
    %c0_i32 = arith.constant 0 : i32
    %c0_i32_0 = arith.constant 0 : i32
    %c0_i32_1 = arith.constant 0 : i32
    return %arg0, %c0_i32, %c0_i32_0 : i32, i32, i32
  }
  func.func @transform_6(%arg0: i32) -> (i32, i32, i32) {
    %c0_i32 = arith.constant 0 : i32
    %c0_i32_0 = arith.constant 0 : i32
    %c0_i32_1 = arith.constant 0 : i32
    return %arg0, %c0_i32, %c0_i32_0 : i32, i32, i32
  }
  func.func @transform_7(%arg0: i32) -> (i32, i32, i32) {
    %c0_i32 = arith.constant 0 : i32
    %c0_i32_0 = arith.constant 0 : i32
    %c0_i32_1 = arith.constant 0 : i32
    return %arg0, %c0_i32, %c0_i32_0 : i32, i32, i32
  }
  func.func @transform_8(%arg0: i32) -> (i32, i32, i32) {
    %c0_i32 = arith.constant 0 : i32
    %c0_i32_0 = arith.constant 0 : i32
    %c0_i32_1 = arith.constant 0 : i32
    return %arg0, %c0_i32, %c0_i32_0 : i32, i32, i32
  }
  func.func @transform_9(%arg0: i32) -> (i32, i32, i32) {
    %c0_i32 = arith.constant 0 : i32
    %c0_i32_0 = arith.constant 0 : i32
    %c0_i32_1 = arith.constant 0 : i32
    return %arg0, %c0_i32, %c0_i32_0 : i32, i32, i32
  }
  func.func @transform_10(%arg0: i32) -> (i32, i32, i32) {
    %c0_i32 = arith.constant 0 : i32
    %c0_i32_0 = arith.constant 0 : i32
    %c0_i32_1 = arith.constant 0 : i32
    return %arg0, %c0_i32, %c0_i32_0 : i32, i32, i32
  }
  func.func @transform_11(%arg0: i32) -> (i32, i32, i32) {
    %c0_i32 = arith.constant 0 : i32
    %c0_i32_0 = arith.constant 0 : i32
    %c0_i32_1 = arith.constant 0 : i32
    return %arg0, %c0_i32, %c0_i32_0 : i32, i32, i32
  }
  func.func @transform_12(%arg0: i32) -> (i32, i32, i32) {
    %c0_i32 = arith.constant 0 : i32
    %c0_i32_0 = arith.constant 0 : i32
    %c0_i32_1 = arith.constant 0 : i32
    return %arg0, %c0_i32, %c0_i32_0 : i32, i32, i32
  }
  func.func @transform_13(%arg0: i32) -> (i32, i32, i32) {
    %c0_i32 = arith.constant 0 : i32
    %c0_i32_0 = arith.constant 0 : i32
    %c0_i32_1 = arith.constant 0 : i32
    return %arg0, %c0_i32, %c0_i32_0 : i32, i32, i32
  }
  func.func @transform_14(%arg0: i32) -> (i32, i32, i32) {
    %c0_i32 = arith.constant 0 : i32
    %c0_i32_0 = arith.constant 0 : i32
    %c0_i32_1 = arith.constant 0 : i32
    return %arg0, %c0_i32, %c0_i32_0 : i32, i32, i32
  }
  func.func @transform_15(%arg0: i32) -> (i32, i32, i32) {
    %c0_i32 = arith.constant 0 : i32
    %c0_i32_0 = arith.constant 0 : i32
    %c0_i32_1 = arith.constant 0 : i32
    return %arg0, %c0_i32, %c0_i32_0 : i32, i32, i32
  }
  func.func @transform_16(%arg0: i32) -> (i32, i32) {
    %c0_i32 = arith.constant 0 : i32
    %c0_i32_0 = arith.constant 0 : i32
    %c0_i32_1 = arith.constant 0 : i32
    return %c0_i32, %c0_i32_0 : i32, i32
  }
}

module attributes {stable_mosaic.version = 11 : i64} {
  func.func @_pooler_kernel(%arg0: i32, %arg1: memref<2x32xf32, #tpu.memory_space<vmem>>, %arg2: memref<32x32xbf16, #tpu.memory_space<vmem>>, %arg3: memref<1x32xf32, #tpu.memory_space<vmem>>, %arg4: memref<32x2xbf16, #tpu.memory_space<vmem>>, %arg5: memref<1x2xf32, #tpu.memory_space<vmem>>, %arg6: memref<2x2xf32, #tpu.memory_space<vmem>>) attributes {dimension_semantics = [#tpu.dimension_semantics<arbitrary>], iteration_bounds = array<i64: 1>, scalar_prefetch = 0 : i64, scratch_operands = 0 : i64, tpu.core_type = #tpu.core_type<tc>, window_params = [{pipeline_mode = #tpu.pipeline_mode<synchronous>, transform_indices = @transform_0, window_bounds = array<i64: 2, 32>}, {pipeline_mode = #tpu.pipeline_mode<synchronous>, transform_indices = @transform_1, window_bounds = array<i64: 32, 32>}, {pipeline_mode = #tpu.pipeline_mode<synchronous>, transform_indices = @transform_2, window_bounds = array<i64: 1, 32>}, {pipeline_mode = #tpu.pipeline_mode<synchronous>, transform_indices = @transform_3, window_bounds = array<i64: 32, 2>}, {pipeline_mode = #tpu.pipeline_mode<synchronous>, transform_indices = @transform_4, window_bounds = array<i64: 1, 2>}, {pipeline_mode = #tpu.pipeline_mode<synchronous>, transform_indices = @transform_5, window_bounds = array<i64: 2, 2>}]} {
    %c0 = arith.constant 0 : index
    %c0_0 = arith.constant 0 : index
    %0 = vector.load %arg1[%c0, %c0_0] : memref<2x32xf32, #tpu.memory_space<vmem>>, vector<2x32xf32>
    %1 = arith.truncf %0 : vector<2x32xf32> to vector<2x32xbf16>
    %c0_1 = arith.constant 0 : index
    %c0_2 = arith.constant 0 : index
    %2 = vector.load %arg2[%c0_1, %c0_2] : memref<32x32xbf16, #tpu.memory_space<vmem>>, vector<32x32xbf16>
    %cst = arith.constant dense<0.000000e+00> : vector<2x32xf32>
    %3 = tpu.matmul %1, %2, %cst {dimension_numbers = #tpu.dot_dimension_numbers<[1], [0], [0], [1], [0, 0, 1, 1], [], []>} : vector<2x32xbf16>, vector<32x32xbf16>, vector<2x32xf32> -> vector<2x32xf32>
    %c0_3 = arith.constant 0 : index
    %c0_4 = arith.constant 0 : index
    %4 = vector.load %arg3[%c0_3, %c0_4] : memref<1x32xf32, #tpu.memory_space<vmem>>, vector<1x32xf32>
    %5 = vector.broadcast %4 : vector<1x32xf32> to vector<2x32xf32>
    %6 = arith.addf %3, %5 : vector<2x32xf32>
    %7 = math.tanh %6 : vector<2x32xf32>
    %8 = arith.truncf %7 : vector<2x32xf32> to vector<2x32xbf16>
    %c0_5 = arith.constant 0 : index
    %c0_6 = arith.constant 0 : index
    %9 = vector.load %arg4[%c0_5, %c0_6] : memref<32x2xbf16, #tpu.memory_space<vmem>>, vector<32x2xbf16>
    %cst_7 = arith.constant dense<0.000000e+00> : vector<2x2xf32>
    %10 = tpu.matmul %8, %9, %cst_7 {dimension_numbers = #tpu.dot_dimension_numbers<[1], [0], [0], [1], [0, 0, 1, 1], [], []>} : vector<2x32xbf16>, vector<32x2xbf16>, vector<2x2xf32> -> vector<2x2xf32>
    %c0_8 = arith.constant 0 : index
    %c0_9 = arith.constant 0 : index
    %11 = vector.load %arg5[%c0_8, %c0_9] : memref<1x2xf32, #tpu.memory_space<vmem>>, vector<1x2xf32>
    %12 = vector.broadcast %11 : vector<1x2xf32> to vector<2x2xf32>
    %13 = arith.addf %10, %12 : vector<2x2xf32>
    %c0_10 = arith.constant 0 : index
    %c0_11 = arith.constant 0 : index
    %14 = vector.load %arg6[%c0_10, %c0_11] : memref<2x2xf32, #tpu.memory_space<vmem>>, vector<2x2xf32>
    tpu.vector_store %arg6[%c0_10, %c0_11], %13 {strides = array<i32>} : memref<2x2xf32, #tpu.memory_space<vmem>>, vector<2x2xf32>,
    return
  }
  func.func @transform_0(%arg0: i32) -> (i32, i32) {
    %c0_i32 = arith.constant 0 : i32
    %c0_i32_0 = arith.constant 0 : i32
    %c0_i32_1 = arith.constant 0 : i32
    return %c0_i32, %c0_i32_0 : i32, i32
  }
  func.func @transform_1(%arg0: i32) -> (i32, i32) {
    %c0_i32 = arith.constant 0 : i32
    %c0_i32_0 = arith.constant 0 : i32
    %c0_i32_1 = arith.constant 0 : i32
    return %c0_i32, %c0_i32_0 : i32, i32
  }
  func.func @transform_2(%arg0: i32) -> (i32, i32) {
    %c0_i32 = arith.constant 0 : i32
    %c0_i32_0 = arith.constant 0 : i32
    %c0_i32_1 = arith.constant 0 : i32
    return %c0_i32, %c0_i32_0 : i32, i32
  }
  func.func @transform_3(%arg0: i32) -> (i32, i32) {
    %c0_i32 = arith.constant 0 : i32
    %c0_i32_0 = arith.constant 0 : i32
    %c0_i32_1 = arith.constant 0 : i32
    return %c0_i32, %c0_i32_0 : i32, i32
  }
  func.func @transform_4(%arg0: i32) -> (i32, i32) {
    %c0_i32 = arith.constant 0 : i32
    %c0_i32_0 = arith.constant 0 : i32
    %c0_i32_1 = arith.constant 0 : i32
    return %c0_i32, %c0_i32_0 : i32, i32
  }
  func.func @transform_5(%arg0: i32) -> (i32, i32) {
    %c0_i32 = arith.constant 0 : i32
    %c0_i32_0 = arith.constant 0 : i32
    %c0_i32_1 = arith.constant 0 : i32
    return %c0_i32, %c0_i32_0 : i32, i32
  }
}

</mosaic_0001>

<llo_original>
// kernel: bert_wrapper_forward.3
$region0: #{bert_wrapper_forward.3}
  #allocation0 [shape = 'u32[]', space=smem, size = 0x4, offset = 0x4, fixed_abs, tag = 'smem constant byte address 0x4 - core index']
  #allocation1 [shape = 'u32[72,128]{1,0:T(1,128)}', space=vmem, size = 0x9000, scoped, tag = 'internal scratch']
  %s0 = inlined_call_operand.vmem [shape: f32[2,32], index: 0, kind: input, shape index: {}]
  %s1 = inlined_call_operand.vmem [shape: bf16[32,32], index: 1, kind: input, shape index: {}]
  %s2 = inlined_call_operand.vmem [shape: f32[1,32], index: 2, kind: input, shape index: {}]
  %s3 = inlined_call_operand.vmem [shape: bf16[32,2], index: 3, kind: input, shape index: {}]
  %s4 = inlined_call_operand.vmem [shape: f32[1,2], index: 4, kind: input, shape index: {}]
  %s5 = inlined_call_operand.hbm [shape: f32[2,2], index: 5, kind: output, shape index: {}]
  %s6 = sld [smem:[#allocation0]]
  $region30: #{bert_wrapper_forward.3} parent=0
    _
  %s8 = ssub.s32 1, %s6
  %s9 = scalar_select 0, %s8, %s6
  $region1: #{bert_wrapper_forward.3} parent=0
    #allocation2 [shape = 'u8[1024]{0}', space=vmem, size = 0x400, scoped, tag = 'output window, operand 0, single buffered']
    #allocation3 [shape = 's32[1]{0}', space=sflag, size = 0x4, scoped, tag = 'scoped memory for bert_wrapper_forward.3']
    %10 = vsyncpa [#allocation3], 0
    // Predicated region
    $region2: #{bert_wrapper_forward.3} parent=1 // pred_check
      _
    $region3: #{bert_wrapper_forward.3} parent=1 // pred_check_branch
      %12 = sbr.rel (0) target = $region5
    $region4: #{bert_wrapper_forward.3} parent=1 // pred_region
      _
    $region5: #{bert_wrapper_forward.3} parent=1 // pred_fallthru
      _
    // Predicated region
    $region6: #{bert_wrapper_forward.3} parent=1 // pred_check
      _
    $region7: #{bert_wrapper_forward.3} parent=1 // pred_check_branch
      %14 = sbr.rel (0) target = $region9
    $region8: #{bert_wrapper_forward.3} parent=1 // pred_region
      _
    $region9: #{bert_wrapper_forward.3} parent=1 // pred_fallthru
      _
    // Predicated region
    $region10: #{bert_wrapper_forward.3} parent=1 // pred_check
      _
    $region11: #{bert_wrapper_forward.3} parent=1 // pred_check_branch
      %16 = sbr.rel (0) target = $region13
    $region12: #{bert_wrapper_forward.3} parent=1 // pred_region
      _
    $region13: #{bert_wrapper_forward.3} parent=1 // pred_fallthru
      _
    // Predicated region
    $region14: #{bert_wrapper_forward.3} parent=1 // pred_check
      _
    $region15: #{bert_wrapper_forward.3} parent=1 // pred_check_branch
      %18 = sbr.rel (0) target = $region17
    $region16: #{bert_wrapper_forward.3} parent=1 // pred_region
      _
    $region17: #{bert_wrapper_forward.3} parent=1 // pred_fallthru
      _
    // Predicated region
    $region18: #{bert_wrapper_forward.3} parent=1 // pred_check
      _
    $region19: #{bert_wrapper_forward.3} parent=1 // pred_check_branch
      %20 = sbr.rel (0) target = $region21
    $region20: #{bert_wrapper_forward.3} parent=1 // pred_region
      _
    $region21: #{bert_wrapper_forward.3} parent=1 // pred_fallthru
      _
    %v22 = vld [vmem:[%s0] sm:$0x3]
    %v23 = vpack.c.bf16 %v22, %v22
    %v24 = vld [vmem:[%s1] sm:$0xf]
    %v25 = vld [vmem:[%s1 + $0x4] sm:$0xf]
    %v26 = vld [vmem:[%s1 + $0x8] sm:$0xf]
    %v27 = vld [vmem:[%s1 + $0xc] sm:$0xf]
    %v28 = vld [vmem:[%s2] sm:$0x1]
    %v30 = vperm.slane %v28, 0
    %v36 = vunpack.c.l.b16 %v24
    %v37 = vunpack.c.l.b16 %v25
    %v38 = vunpack.c.l.b16 %v26
    %v39 = vunpack.c.l.b16 %v27
    %v40 = vpack.c.b16 %v37, %v36
    %v41 = vpack.c.b16 %v39, %v38
    %vm44 = vcmask 261120
    %v46 = vsel %vm44, %v23, 0
    %48 = vmatpush.bf16.msra.mxu0 0
    %49 = vmatpush.bf16.msra.mxu0 0
    %50 = vmatpush.bf16.msra.mxu0 0
    %51 = vmatpush.bf16.msra.mxu0 0
    %52 = vmatpush.bf16.msra.mxu0 0
    %53 = vmatpush.bf16.msra.mxu0 0
    %54 = vmatpush.bf16.msra.mxu0 %v41
    %55 = vmatpush.bf16.msra.mxu0 %v40
    %56 = vmatmul.bf16.gmra.mxu0 %v46
    %v57 = vpop.f32.mrf.mxu0
    %v58 = vadd.f32 %v30, %v57
    %v59 = vpop.f32.mrf.mxu0
    %60 = vdwg.mxu0
    %v61 = vtanh.pop %v58
    %v62 = vpack.c.bf16 %v61, %v61
    %v63 = vld [vmem:[%s3] sm:$0xf]
    %v64 = vld [vmem:[%s3 + $0x4] sm:$0xf]
    %v65 = vld [vmem:[%s3 + $0x8] sm:$0xf]
    %v66 = vld [vmem:[%s3 + $0xc] sm:$0xf]
    %v67 = vld [vmem:[%s4] sm:$0x1]
    %v69 = vperm.slane %v67, 0
    %v75 = vunpack.c.l.b16 %v63
    %v76 = vunpack.c.l.b16 %v64
    %v77 = vunpack.c.l.b16 %v65
    %v78 = vunpack.c.l.b16 %v66
    %v79 = vpack.c.b16 %v76, %v75
    %v80 = vpack.c.b16 %v78, %v77
    %v84 = vsel %vm44, %v62, 0
    %86 = vmatpush.bf16.msra.mxu0 0
    %87 = vmatpush.bf16.msra.mxu0 0
    %88 = vmatpush.bf16.msra.mxu0 0
    %89 = vmatpush.bf16.msra.mxu0 0
    %90 = vmatpush.bf16.msra.mxu0 0
    %91 = vmatpush.bf16.msra.mxu0 0
    %92 = vmatpush.bf16.msra.mxu0 %v80
    %93 = vmatpush.bf16.msra.mxu0 %v79
    %94 = vmatmul.bf16.gmra.mxu0 %v84
    %v95 = vpop.f32.mrf.mxu0
    %v96 = vadd.f32 %v69, %v95
    %v97 = vpop.f32.mrf.mxu0
    %98 = vdwg.mxu0
    %vm99 = vcmask 9216
    %100 = vst.msk [vmem:[#allocation2] sm:$0x3] %vm99, %v96
    // Predicated region
    $region22: #{bert_wrapper_forward.3} parent=1 // pred_check
      _
    $region23: #{bert_wrapper_forward.3} parent=1 // pred_check_branch
      %102 = sbr.rel (0) target = $region25
    $region24: #{bert_wrapper_forward.3} parent=1 // pred_region
      %104 = vsyncadd [#allocation3], 0
      %s106 = sshll.u32 [#allocation2], 4
      %s107 = int_to_ptr.vmem [resolvable:$true] %s106
      %s108 = sshll.u32 %s5, 4
      %s109 = int_to_ptr.hbm [resolvable:$true] %s108
      %111 = dma.vmem_to_hbm [thread:$0]  %s107, 32, %s109, [#allocation3]
    $region25: #{bert_wrapper_forward.3} parent=1 // pred_fallthru
      _
    // Predicated region
    $region26: #{bert_wrapper_forward.3} parent=1 // pred_check
      _
    $region27: #{bert_wrapper_forward.3} parent=1 // pred_check_branch
      %113 = sbr.rel (0) target = $region29
    $region28: #{bert_wrapper_forward.3} parent=1 // pred_region
      %115 = dma.done [#allocation3], 32
    $region29: #{bert_wrapper_forward.3} parent=1 // pred_fallthru
      _
    %116 = vsyncpa [#allocation3], 1

// kernel: bert_wrapper_forward.2
$region0: #{bert_wrapper_forward.2}
  #allocation0 [shape = 'u32[]', space=smem, size = 0x4, offset = 0x4, fixed_abs, tag = 'smem constant byte address 0x4 - core index']
  #allocation1 [shape = 'u32[72,128]{1,0:T(1,128)}', space=vmem, size = 0x9000, scoped, tag = 'internal scratch']
  #allocation2 [shape = 'f32[16,32]{1,0:T(8,128)}', space=vmem, size = 0x2000, scoped, tag = 'scratch operand']
  %s0 = inlined_call_operand.vmem [shape: f32[16,32], index: 0, kind: input, shape index: {}]
  %s1 = inlined_call_operand.vmem [shape: f32[2,1,8], index: 1, kind: input, shape index: {}]
  %s2 = inlined_call_operand.vmem [shape: f32[1,32], index: 2, kind: input, shape index: {}]
  %s3 = inlined_call_operand.vmem [shape: f32[1,32], index: 3, kind: input, shape index: {}]
  %s4 = inlined_call_operand.vmem [shape: bf16[2,32,96], index: 4, kind: input, shape index: {}]
  %s5 = inlined_call_operand.vmem [shape: f32[2,1,96], index: 5, kind: input, shape index: {}]
  %s6 = inlined_call_operand.vmem [shape: bf16[2,32,32], index: 6, kind: input, shape index: {}]
  %s7 = inlined_call_operand.vmem [shape: f32[2,1,32], index: 7, kind: input, shape index: {}]
  %s8 = inlined_call_operand.vmem [shape: f32[2,1,32], index: 8, kind: input, shape index: {}]
  %s9 = inlined_call_operand.vmem [shape: f32[2,1,32], index: 9, kind: input, shape index: {}]
  %s10 = inlined_call_operand.vmem [shape: bf16[2,32,64], index: 10, kind: input, shape index: {}]
  %s11 = inlined_call_operand.vmem [shape: f32[2,1,64], index: 11, kind: input, shape index: {}]
  %s12 = inlined_call_operand.vmem [shape: bf16[2,64,32], index: 12, kind: input, shape index: {}]
  %s13 = inlined_call_operand.vmem [shape: f32[2,1,32], index: 13, kind: input, shape index: {}]
  %s14 = inlined_call_operand.vmem [shape: f32[2,1,32], index: 14, kind: input, shape index: {}]
  %s15 = inlined_call_operand.vmem [shape: f32[2,1,32], index: 15, kind: input, shape index: {}]
  %s16 = inlined_call_operand.vmem [shape: f32[16,32], index: 16, kind: output, shape index: {}]
  %s17 = sld [smem:[#allocation0]]
  $region101: #{bert_wrapper_forward.2} parent=0
    _
  %s19 = ssub.s32 1, %s17
  %s20 = scalar_select 0, %s19, %s17
  loop: start=0, step=1, limit=4
  $region2: #{bert_wrapper_forward.2} parent=0 // loop_pre_header
    _
  $region3: #{bert_wrapper_forward.2} parent=0 // loop_header
    %s22 = sphi 0, %s26
    %p23 = scmp.ge.s32.totalorder %s22, 4
    %s30 = sphi 0, %s30
    %s32 = sphi 0, %s30
    %s33 = sphi 0, %s32
    %s47 = sphi 0, %s33
    %s51 = sphi 0, %s51
    %s53 = sphi 0, %s51
    %s54 = sphi 0, %s53
    %s68 = sphi 0, %s54
    %s72 = sphi 0, %s72
    %s74 = sphi 0, %s72
    %s75 = sphi 0, %s74
    %s89 = sphi 0, %s75
    %s93 = sphi 0, %s93
    %s95 = sphi 0, %s93
    %s96 = sphi 0, %s95
    %s110 = sphi 0, %s96
    %s116 = sphi 0, %s118
    %s119 = sphi 0, %s116
    %s120 = sphi 0, %s119
    %s136 = sphi 0, %s120
    %s142 = sphi 0, %s144
    %s145 = sphi 0, %s142
    %s146 = sphi 0, %s145
    %s162 = sphi 0, %s146
    %s168 = sphi 0, %s170
    %s171 = sphi 0, %s168
    %s172 = sphi 0, %s171
    %s188 = sphi 0, %s172
    %s194 = sphi 0, %s196
    %s197 = sphi 0, %s194
    %s198 = sphi 0, %s197
    %s214 = sphi 0, %s198
    %s220 = sphi 0, %s222
    %s223 = sphi 0, %s220
    %s224 = sphi 0, %s223
    %s240 = sphi 0, %s224
    %s246 = sphi 0, %s248
    %s249 = sphi 0, %s246
    %s250 = sphi 0, %s249
    %s266 = sphi 0, %s250
    %s272 = sphi 0, %s274
    %s275 = sphi 0, %s272
    %s276 = sphi 0, %s275
    %s292 = sphi 0, %s276
    %s298 = sphi 0, %s300
    %s301 = sphi 0, %s298
    %s302 = sphi 0, %s301
    %s318 = sphi 0, %s302
    %s324 = sphi 0, %s326
    %s327 = sphi 0, %s324
    %s328 = sphi 0, %s327
    %s344 = sphi 0, %s328
    %s350 = sphi 0, %s352
    %s353 = sphi 0, %s350
    %s354 = sphi 0, %s353
    %s370 = sphi 0, %s354
    %s376 = sphi 0, %s378
    %s379 = sphi 0, %s376
    %s380 = sphi 0, %s379
    %s396 = sphi 0, %s380
    %s402 = sphi 0, %s404
    %s405 = sphi 0, %s402
    %s406 = sphi 0, %s405
    %s422 = sphi 0, %s406
    %s426 = sphi 0, %s426
    %s428 = sphi 0, %s426
    %s429 = sphi 0, %s428
    %s443 = sphi 0, %s429
  $region4: #{bert_wrapper_forward.2} parent=0 // loop_header_branch
    %25 = sbr.rel (%p23) target = $region8
  $region5: #{bert_wrapper_forward.2} parent=0 // loop_body
    %s27 = ssub.s32 %s22, 1
    %s28 = ssub.s32 %s22, 2
    %s29 = sadd.s32 %s22, 1
    %s31 = sadd.s32 %s30, 1
    %p34 = scmp.eq.s32.totalorder %s22, 1
    %p35 = scmp.ne.s32.totalorder %s30, %s32
    %p36 = scmp.eq.s32.totalorder %s22, 0
    %p37 = por %p35, %p36
    %p38 = scmp.ne.s32.totalorder %s30, %s32
    %p39 = scmp.eq.s32.totalorder %s27, 1
    %p40 = por %p38, %p39
    %p41 = scmp.ne.s32.totalorder %s32, %s33
    %p42 = scmp.eq.s32.totalorder %s27, 0
    %p43 = por %p41, %p42
    %p44 = scmp.ne.s32.totalorder %s32, %s33
    %p45 = scmp.eq.s32.totalorder %s28, 1
    %p46 = por %p44, %p45
    %p48 = scmp.ne.s32.totalorder %s33, %s47
    %p49 = scmp.eq.s32.totalorder %s28, 0
    %p50 = por %p48, %p49
    %s52 = sadd.s32 %s51, 1
    %p55 = scmp.eq.s32.totalorder %s22, 1
    %p56 = scmp.ne.s32.totalorder %s51, %s53
    %p57 = scmp.eq.s32.totalorder %s22, 0
    %p58 = por %p56, %p57
    %p59 = scmp.ne.s32.totalorder %s51, %s53
    %p60 = scmp.eq.s32.totalorder %s27, 1
    %p61 = por %p59, %p60
    %p62 = scmp.ne.s32.totalorder %s53, %s54
    %p63 = scmp.eq.s32.totalorder %s27, 0
    %p64 = por %p62, %p63
    %p65 = scmp.ne.s32.totalorder %s53, %s54
    %p66 = scmp.eq.s32.totalorder %s28, 1
    %p67 = por %p65, %p66
    %p69 = scmp.ne.s32.totalorder %s54, %s68
    %p70 = scmp.eq.s32.totalorder %s28, 0
    %p71 = por %p69, %p70
    %s73 = sadd.s32 %s72, 1
    %p76 = scmp.eq.s32.totalorder %s22, 1
    %p77 = scmp.ne.s32.totalorder %s72, %s74
    %p78 = scmp.eq.s32.totalorder %s22, 0
    %p79 = por %p77, %p78
    %p80 = scmp.ne.s32.totalorder %s72, %s74
    %p81 = scmp.eq.s32.totalorder %s27, 1
    %p82 = por %p80, %p81
    %p83 = scmp.ne.s32.totalorder %s74, %s75
    %p84 = scmp.eq.s32.totalorder %s27, 0
    %p85 = por %p83, %p84
    %p86 = scmp.ne.s32.totalorder %s74, %s75
    %p87 = scmp.eq.s32.totalorder %s28, 1
    %p88 = por %p86, %p87
    %p90 = scmp.ne.s32.totalorder %s75, %s89
    %p91 = scmp.eq.s32.totalorder %s28, 0
    %p92 = por %p90, %p91
    %s94 = sadd.s32 %s93, 1
    %p97 = scmp.eq.s32.totalorder %s22, 1
    %p98 = scmp.ne.s32.totalorder %s93, %s95
    %p99 = scmp.eq.s32.totalorder %s22, 0
    %p100 = por %p98, %p99
    %p101 = scmp.ne.s32.totalorder %s93, %s95
    %p102 = scmp.eq.s32.totalorder %s27, 1
    %p103 = por %p101, %p102
    %p104 = scmp.ne.s32.totalorder %s95, %s96
    %p105 = scmp.eq.s32.totalorder %s27, 0
    %p106 = por %p104, %p105
    %p107 = scmp.ne.s32.totalorder %s95, %s96
    %p108 = scmp.eq.s32.totalorder %s28, 1
    %p109 = por %p107, %p108
    %p111 = scmp.ne.s32.totalorder %s96, %s110
    %p112 = scmp.eq.s32.totalorder %s28, 0
    %p113 = por %p111, %p112
    %s114 = ssub.s32 %s22, %s29
    %p115 = scmp.eq.s32.totalorder %s114, 0
    %s117 = sadd.s32 %s116, 1
    %s118 = scalar_select %p115, %s116, %s117
    %p121 = pneg %p115
    %p122 = scmp.eq.s32.totalorder %s22, 1
    %p123 = por %p121, %p122
    %p124 = scmp.ne.s32.totalorder %s116, %s119
    %p125 = scmp.eq.s32.totalorder %s22, 0
    %p126 = por %p124, %p125
    %p127 = scmp.ne.s32.totalorder %s116, %s119
    %p128 = scmp.eq.s32.totalorder %s27, 1
    %p129 = por %p127, %p128
    %p130 = scmp.ne.s32.totalorder %s119, %s120
    %p131 = scmp.eq.s32.totalorder %s27, 0
    %p132 = por %p130, %p131
    %p133 = scmp.ne.s32.totalorder %s119, %s120
    %p134 = scmp.eq.s32.totalorder %s28, 1
    %p135 = por %p133, %p134
    %p137 = scmp.ne.s32.totalorder %s120, %s136
    %p138 = scmp.eq.s32.totalorder %s28, 0
    %p139 = por %p137, %p138
    %s140 = ssub.s32 %s22, %s29
    %p141 = scmp.eq.s32.totalorder %s140, 0
    %s143 = sadd.s32 %s142, 1
    %s144 = scalar_select %p141, %s142, %s143
    %p147 = pneg %p141
    %p148 = scmp.eq.s32.totalorder %s22, 1
    %p149 = por %p147, %p148
    %p150 = scmp.ne.s32.totalorder %s142, %s145
    %p151 = scmp.eq.s32.totalorder %s22, 0
    %p152 = por %p150, %p151
    %p153 = scmp.ne.s32.totalorder %s142, %s145
    %p154 = scmp.eq.s32.totalorder %s27, 1
    %p155 = por %p153, %p154
    %p156 = scmp.ne.s32.totalorder %s145, %s146
    %p157 = scmp.eq.s32.totalorder %s27, 0
    %p158 = por %p156, %p157
    %p159 = scmp.ne.s32.totalorder %s145, %s146
    %p160 = scmp.eq.s32.totalorder %s28, 1
    %p161 = por %p159, %p160
    %p163 = scmp.ne.s32.totalorder %s146, %s162
    %p164 = scmp.eq.s32.totalorder %s28, 0
    %p165 = por %p163, %p164
    %s166 = ssub.s32 %s22, %s29
    %p167 = scmp.eq.s32.totalorder %s166, 0
    %s169 = sadd.s32 %s168, 1
    %s170 = scalar_select %p167, %s168, %s169
    %p173 = pneg %p167
    %p174 = scmp.eq.s32.totalorder %s22, 1
    %p175 = por %p173, %p174
    %p176 = scmp.ne.s32.totalorder %s168, %s171
    %p177 = scmp.eq.s32.totalorder %s22, 0
    %p178 = por %p176, %p177
    %p179 = scmp.ne.s32.totalorder %s168, %s171
    %p180 = scmp.eq.s32.totalorder %s27, 1
    %p181 = por %p179, %p180
    %p182 = scmp.ne.s32.totalorder %s171, %s172
    %p183 = scmp.eq.s32.totalorder %s27, 0
    %p184 = por %p182, %p183
    %p185 = scmp.ne.s32.totalorder %s171, %s172
    %p186 = scmp.eq.s32.totalorder %s28, 1
    %p187 = por %p185, %p186
    %p189 = scmp.ne.s32.totalorder %s172, %s188
    %p190 = scmp.eq.s32.totalorder %s28, 0
    %p191 = por %p189, %p190
    %s192 = ssub.s32 %s22, %s29
    %p193 = scmp.eq.s32.totalorder %s192, 0
    %s195 = sadd.s32 %s194, 1
    %s196 = scalar_select %p193, %s194, %s195
    %p199 = pneg %p193
    %p200 = scmp.eq.s32.totalorder %s22, 1
    %p201 = por %p199, %p200
    %p202 = scmp.ne.s32.totalorder %s194, %s197
    %p203 = scmp.eq.s32.totalorder %s22, 0
    %p204 = por %p202, %p203
    %p205 = scmp.ne.s32.totalorder %s194, %s197
    %p206 = scmp.eq.s32.totalorder %s27, 1
    %p207 = por %p205, %p206
    %p208 = scmp.ne.s32.totalorder %s197, %s198
    %p209 = scmp.eq.s32.totalorder %s27, 0
    %p210 = por %p208, %p209
    %p211 = scmp.ne.s32.totalorder %s197, %s198
    %p212 = scmp.eq.s32.totalorder %s28, 1
    %p213 = por %p211, %p212
    %p215 = scmp.ne.s32.totalorder %s198, %s214
    %p216 = scmp.eq.s32.totalorder %s28, 0
    %p217 = por %p215, %p216
    %s218 = ssub.s32 %s22, %s29
    %p219 = scmp.eq.s32.totalorder %s218, 0
    %s221 = sadd.s32 %s220, 1
    %s222 = scalar_select %p219, %s220, %s221
    %p225 = pneg %p219
    %p226 = scmp.eq.s32.totalorder %s22, 1
    %p227 = por %p225, %p226
    %p228 = scmp.ne.s32.totalorder %s220, %s223
    %p229 = scmp.eq.s32.totalorder %s22, 0
    %p230 = por %p228, %p229
    %p231 = scmp.ne.s32.totalorder %s220, %s223
    %p232 = scmp.eq.s32.totalorder %s27, 1
    %p233 = por %p231, %p232
    %p234 = scmp.ne.s32.totalorder %s223, %s224
    %p235 = scmp.eq.s32.totalorder %s27, 0
    %p236 = por %p234, %p235
    %p237 = scmp.ne.s32.totalorder %s223, %s224
    %p238 = scmp.eq.s32.totalorder %s28, 1
    %p239 = por %p237, %p238
    %p241 = scmp.ne.s32.totalorder %s224, %s240
    %p242 = scmp.eq.s32.totalorder %s28, 0
    %p243 = por %p241, %p242
    %s244 = ssub.s32 %s22, %s29
    %p245 = scmp.eq.s32.totalorder %s244, 0
    %s247 = sadd.s32 %s246, 1
    %s248 = scalar_select %p245, %s246, %s247
    %p251 = pneg %p245
    %p252 = scmp.eq.s32.totalorder %s22, 1
    %p253 = por %p251, %p252
    %p254 = scmp.ne.s32.totalorder %s246, %s249
    %p255 = scmp.eq.s32.totalorder %s22, 0
    %p256 = por %p254, %p255
    %p257 = scmp.ne.s32.totalorder %s246, %s249
    %p258 = scmp.eq.s32.totalorder %s27, 1
    %p259 = por %p257, %p258
    %p260 = scmp.ne.s32.totalorder %s249, %s250
    %p261 = scmp.eq.s32.totalorder %s27, 0
    %p262 = por %p260, %p261
    %p263 = scmp.ne.s32.totalorder %s249, %s250
    %p264 = scmp.eq.s32.totalorder %s28, 1
    %p265 = por %p263, %p264
    %p267 = scmp.ne.s32.totalorder %s250, %s266
    %p268 = scmp.eq.s32.totalorder %s28, 0
    %p269 = por %p267, %p268
    %s270 = ssub.s32 %s22, %s29
    %p271 = scmp.eq.s32.totalorder %s270, 0
    %s273 = sadd.s32 %s272, 1
    %s274 = scalar_select %p271, %s272, %s273
    %p277 = pneg %p271
    %p278 = scmp.eq.s32.totalorder %s22, 1
    %p279 = por %p277, %p278
    %p280 = scmp.ne.s32.totalorder %s272, %s275
    %p281 = scmp.eq.s32.totalorder %s22, 0
    %p282 = por %p280, %p281
    %p283 = scmp.ne.s32.totalorder %s272, %s275
    %p284 = scmp.eq.s32.totalorder %s27, 1
    %p285 = por %p283, %p284
    %p286 = scmp.ne.s32.totalorder %s275, %s276
    %p287 = scmp.eq.s32.totalorder %s27, 0
    %p288 = por %p286, %p287
    %p289 = scmp.ne.s32.totalorder %s275, %s276
    %p290 = scmp.eq.s32.totalorder %s28, 1
    %p291 = por %p289, %p290
    %p293 = scmp.ne.s32.totalorder %s276, %s292
    %p294 = scmp.eq.s32.totalorder %s28, 0
    %p295 = por %p293, %p294
    %s296 = ssub.s32 %s22, %s29
    %p297 = scmp.eq.s32.totalorder %s296, 0
    %s299 = sadd.s32 %s298, 1
    %s300 = scalar_select %p297, %s298, %s299
    %p303 = pneg %p297
    %p304 = scmp.eq.s32.totalorder %s22, 1
    %p305 = por %p303, %p304
    %p306 = scmp.ne.s32.totalorder %s298, %s301
    %p307 = scmp.eq.s32.totalorder %s22, 0
    %p308 = por %p306, %p307
    %p309 = scmp.ne.s32.totalorder %s298, %s301
    %p310 = scmp.eq.s32.totalorder %s27, 1
    %p311 = por %p309, %p310
    %p312 = scmp.ne.s32.totalorder %s301, %s302
    %p313 = scmp.eq.s32.totalorder %s27, 0
    %p314 = por %p312, %p313
    %p315 = scmp.ne.s32.totalorder %s301, %s302
    %p316 = scmp.eq.s32.totalorder %s28, 1
    %p317 = por %p315, %p316
    %p319 = scmp.ne.s32.totalorder %s302, %s318
    %p320 = scmp.eq.s32.totalorder %s28, 0
    %p321 = por %p319, %p320
    %s322 = ssub.s32 %s22, %s29
    %p323 = scmp.eq.s32.totalorder %s322, 0
    %s325 = sadd.s32 %s324, 1
    %s326 = scalar_select %p323, %s324, %s325
    %p329 = pneg %p323
    %p330 = scmp.eq.s32.totalorder %s22, 1
    %p331 = por %p329, %p330
    %p332 = scmp.ne.s32.totalorder %s324, %s327
    %p333 = scmp.eq.s32.totalorder %s22, 0
    %p334 = por %p332, %p333
    %p335 = scmp.ne.s32.totalorder %s324, %s327
    %p336 = scmp.eq.s32.totalorder %s27, 1
    %p337 = por %p335, %p336
    %p338 = scmp.ne.s32.totalorder %s327, %s328
    %p339 = scmp.eq.s32.totalorder %s27, 0
    %p340 = por %p338, %p339
    %p341 = scmp.ne.s32.totalorder %s327, %s328
    %p342 = scmp.eq.s32.totalorder %s28, 1
    %p343 = por %p341, %p342
    %p345 = scmp.ne.s32.totalorder %s328, %s344
    %p346 = scmp.eq.s32.totalorder %s28, 0
    %p347 = por %p345, %p346
    %s348 = ssub.s32 %s22, %s29
    %p349 = scmp.eq.s32.totalorder %s348, 0
    %s351 = sadd.s32 %s350, 1
    %s352 = scalar_select %p349, %s350, %s351
    %p355 = pneg %p349
    %p356 = scmp.eq.s32.totalorder %s22, 1
    %p357 = por %p355, %p356
    %p358 = scmp.ne.s32.totalorder %s350, %s353
    %p359 = scmp.eq.s32.totalorder %s22, 0
    %p360 = por %p358, %p359
    %p361 = scmp.ne.s32.totalorder %s350, %s353
    %p362 = scmp.eq.s32.totalorder %s27, 1
    %p363 = por %p361, %p362
    %p364 = scmp.ne.s32.totalorder %s353, %s354
    %p365 = scmp.eq.s32.totalorder %s27, 0
    %p366 = por %p364, %p365
    %p367 = scmp.ne.s32.totalorder %s353, %s354
    %p368 = scmp.eq.s32.totalorder %s28, 1
    %p369 = por %p367, %p368
    %p371 = scmp.ne.s32.totalorder %s354, %s370
    %p372 = scmp.eq.s32.totalorder %s28, 0
    %p373 = por %p371, %p372
    %s374 = ssub.s32 %s22, %s29
    %p375 = scmp.eq.s32.totalorder %s374, 0
    %s377 = sadd.s32 %s376, 1
    %s378 = scalar_select %p375, %s376, %s377
    %p381 = pneg %p375
    %p382 = scmp.eq.s32.totalorder %s22, 1
    %p383 = por %p381, %p382
    %p384 = scmp.ne.s32.totalorder %s376, %s379
    %p385 = scmp.eq.s32.totalorder %s22, 0
    %p386 = por %p384, %p385
    %p387 = scmp.ne.s32.totalorder %s376, %s379
    %p388 = scmp.eq.s32.totalorder %s27, 1
    %p389 = por %p387, %p388
    %p390 = scmp.ne.s32.totalorder %s379, %s380
    %p391 = scmp.eq.s32.totalorder %s27, 0
    %p392 = por %p390, %p391
    %p393 = scmp.ne.s32.totalorder %s379, %s380
    %p394 = scmp.eq.s32.totalorder %s28, 1
    %p395 = por %p393, %p394
    %p397 = scmp.ne.s32.totalorder %s380, %s396
    %p398 = scmp.eq.s32.totalorder %s28, 0
    %p399 = por %p397, %p398
    %s400 = ssub.s32 %s22, %s29
    %p401 = scmp.eq.s32.totalorder %s400, 0
    %s403 = sadd.s32 %s402, 1
    %s404 = scalar_select %p401, %s402, %s403
    %p407 = pneg %p401
    %p408 = scmp.eq.s32.totalorder %s22, 1
    %p409 = por %p407, %p408
    %p410 = scmp.ne.s32.totalorder %s402, %s405
    %p411 = scmp.eq.s32.totalorder %s22, 0
    %p412 = por %p410, %p411
    %p413 = scmp.ne.s32.totalorder %s402, %s405
    %p414 = scmp.eq.s32.totalorder %s27, 1
    %p415 = por %p413, %p414
    %p416 = scmp.ne.s32.totalorder %s405, %s406
    %p417 = scmp.eq.s32.totalorder %s27, 0
    %p418 = por %p416, %p417
    %p419 = scmp.ne.s32.totalorder %s405, %s406
    %p420 = scmp.eq.s32.totalorder %s28, 1
    %p421 = por %p419, %p420
    %p423 = scmp.ne.s32.totalorder %s406, %s422
    %p424 = scmp.eq.s32.totalorder %s28, 0
    %p425 = por %p423, %p424
    %s427 = sadd.s32 %s426, 1
    %p430 = scmp.eq.s32.totalorder %s22, 1
    %p431 = scmp.ne.s32.totalorder %s426, %s428
    %p432 = scmp.eq.s32.totalorder %s22, 0
    %p433 = por %p431, %p432
    %p434 = scmp.ne.s32.totalorder %s426, %s428
    %p435 = scmp.eq.s32.totalorder %s27, 1
    %p436 = por %p434, %p435
    %p437 = scmp.ne.s32.totalorder %s428, %s429
    %p438 = scmp.eq.s32.totalorder %s27, 0
    %p439 = por %p437, %p438
    %p440 = scmp.ne.s32.totalorder %s428, %s429
    %p441 = scmp.eq.s32.totalorder %s28, 1
    %p442 = por %p440, %p441
    %p444 = scmp.ne.s32.totalorder %s429, %s443
    %p445 = scmp.eq.s32.totalorder %s28, 0
    %p446 = por %p444, %p445
    %p447 = scmp.le.s32.totalorder 1, %s22
    %p448 = scmp.lt.s32.totalorder %s22, 3
    %p449 = pnand %p447, %p448
    %p450 = pneg %p449
    // Predicated region
    $region9: #{bert_wrapper_forward.2} parent=5 // pred_check
      _
    $region10: #{bert_wrapper_forward.2} parent=5 // pred_check_branch
      %452 = sbr.rel (%p449) target = $region12
    $region11: #{bert_wrapper_forward.2} parent=5 // pred_region
      %s453 = ssub.s32 %s22, 1
      // Predicated region
      $region13: #{bert_wrapper_forward.2} parent=11 // pred_check
        %p454 = pneg %p43
      $region14: #{bert_wrapper_forward.2} parent=11 // pred_check_branch
        %456 = sbr.rel (%p454) target = $region16
      $region15: #{bert_wrapper_forward.2} parent=11 // pred_region
        _
      $region16: #{bert_wrapper_forward.2} parent=11 // pred_fallthru
        _
      // Predicated region
      $region17: #{bert_wrapper_forward.2} parent=11 // pred_check
        %p457 = pneg %p64
      $region18: #{bert_wrapper_forward.2} parent=11 // pred_check_branch
        %459 = sbr.rel (%p457) target = $region20
      $region19: #{bert_wrapper_forward.2} parent=11 // pred_region
        _
      $region20: #{bert_wrapper_forward.2} parent=11 // pred_fallthru
        _
      // Predicated region
      $region21: #{bert_wrapper_forward.2} parent=11 // pred_check
        %p460 = pneg %p85
      $region22: #{bert_wrapper_forward.2} parent=11 // pred_check_branch
        %462 = sbr.rel (%p460) target = $region24
      $region23: #{bert_wrapper_forward.2} parent=11 // pred_region
        _
      $region24: #{bert_wrapper_forward.2} parent=11 // pred_fallthru
        _
      // Predicated region
      $region25: #{bert_wrapper_forward.2} parent=11 // pred_check
        %p463 = pneg %p106
      $region26: #{bert_wrapper_forward.2} parent=11 // pred_check_branch
        %465 = sbr.rel (%p463) target = $region28
      $region27: #{bert_wrapper_forward.2} parent=11 // pred_region
        _
      $region28: #{bert_wrapper_forward.2} parent=11 // pred_fallthru
        _
    $region12: #{bert_wrapper_forward.2} parent=5 // pred_fallthru
      _
    %p466 = scmp.lt.s32.totalorder %s22, 2
    // Predicated region
    $region29: #{bert_wrapper_forward.2} parent=5 // pred_check
      %p467 = pneg %p466
    $region30: #{bert_wrapper_forward.2} parent=5 // pred_check_branch
      %469 = sbr.rel (%p467) target = $region32
    $region31: #{bert_wrapper_forward.2} parent=5 // pred_region
      // Predicated region
      $region33: #{bert_wrapper_forward.2} parent=31 // pred_check
        %p470 = pneg %p126
      $region34: #{bert_wrapper_forward.2} parent=31 // pred_check_branch
        %472 = sbr.rel (%p470) target = $region36
      $region35: #{bert_wrapper_forward.2} parent=31 // pred_region
        %p473 = scmp.lt.s32.totalorder %s22, 1
        %s474 = scalar_select %p473, %s22, 1
        %s475 = smul.addr %s474, 4
        %s476 = smul.addr %s475, 4
        %s477 = scalar_lea.vmem %s4, %s476
      $region36: #{bert_wrapper_forward.2} parent=31 // pred_fallthru
        _
      // Predicated region
      $region37: #{bert_wrapper_forward.2} parent=31 // pred_check
        %p478 = pneg %p152
      $region38: #{bert_wrapper_forward.2} parent=31 // pred_check_branch
        %480 = sbr.rel (%p478) target = $region40
      $region39: #{bert_wrapper_forward.2} parent=31 // pred_region
        %p481 = scmp.lt.s32.totalorder %s22, 1
        %s482 = scalar_select %p481, %s22, 1
        %s483 = scalar_lea.vmem %s5, %s482
      $region40: #{bert_wrapper_forward.2} parent=31 // pred_fallthru
        _
      // Predicated region
      $region41: #{bert_wrapper_forward.2} parent=31 // pred_check
        %p484 = pneg %p178
      $region42: #{bert_wrapper_forward.2} parent=31 // pred_check_branch
        %486 = sbr.rel (%p484) target = $region44
      $region43: #{bert_wrapper_forward.2} parent=31 // pred_region
        %p487 = scmp.lt.s32.totalorder %s22, 1
        %s488 = scalar_select %p487, %s22, 1
        %s489 = smul.addr %s488, 4
        %s490 = smul.addr %s489, 4
        %s491 = scalar_lea.vmem %s6, %s490
      $region44: #{bert_wrapper_forward.2} parent=31 // pred_fallthru
        _
      // Predicated region
      $region45: #{bert_wrapper_forward.2} parent=31 // pred_check
        %p492 = pneg %p204
      $region46: #{bert_wrapper_forward.2} parent=31 // pred_check_branch
        %494 = sbr.rel (%p492) target = $region48
      $region47: #{bert_wrapper_forward.2} parent=31 // pred_region
        %p495 = scmp.lt.s32.totalorder %s22, 1
        %s496 = scalar_select %p495, %s22, 1
        %s497 = scalar_lea.vmem %s7, %s496
      $region48: #{bert_wrapper_forward.2} parent=31 // pred_fallthru
        _
      // Predicated region
      $region49: #{bert_wrapper_forward.2} parent=31 // pred_check
        %p498 = pneg %p230
      $region50: #{bert_wrapper_forward.2} parent=31 // pred_check_branch
        %500 = sbr.rel (%p498) target = $region52
      $region51: #{bert_wrapper_forward.2} parent=31 // pred_region
        %p501 = scmp.lt.s32.totalorder %s22, 1
        %s502 = scalar_select %p501, %s22, 1
        %s503 = scalar_lea.vmem %s8, %s502
      $region52: #{bert_wrapper_forward.2} parent=31 // pred_fallthru
        _
      // Predicated region
      $region53: #{bert_wrapper_forward.2} parent=31 // pred_check
        %p504 = pneg %p256
      $region54: #{bert_wrapper_forward.2} parent=31 // pred_check_branch
        %506 = sbr.rel (%p504) target = $region56
      $region55: #{bert_wrapper_forward.2} parent=31 // pred_region
        %p507 = scmp.lt.s32.totalorder %s22, 1
        %s508 = scalar_select %p507, %s22, 1
        %s509 = scalar_lea.vmem %s9, %s508
      $region56: #{bert_wrapper_forward.2} parent=31 // pred_fallthru
        _
      // Predicated region
      $region57: #{bert_wrapper_forward.2} parent=31 // pred_check
        %p510 = pneg %p282
      $region58: #{bert_wrapper_forward.2} parent=31 // pred_check_branch
        %512 = sbr.rel (%p510) target = $region60
      $region59: #{bert_wrapper_forward.2} parent=31 // pred_region
        %p513 = scmp.lt.s32.totalorder %s22, 1
        %s514 = scalar_select %p513, %s22, 1
        %s515 = smul.addr %s514, 4
        %s516 = smul.addr %s515, 4
        %s517 = scalar_lea.vmem %s10, %s516
      $region60: #{bert_wrapper_forward.2} parent=31 // pred_fallthru
        _
      // Predicated region
      $region61: #{bert_wrapper_forward.2} parent=31 // pred_check
        %p518 = pneg %p308
      $region62: #{bert_wrapper_forward.2} parent=31 // pred_check_branch
        %520 = sbr.rel (%p518) target = $region64
      $region63: #{bert_wrapper_forward.2} parent=31 // pred_region
        %p521 = scmp.lt.s32.totalorder %s22, 1
        %s522 = scalar_select %p521, %s22, 1
        %s523 = scalar_lea.vmem %s11, %s522
      $region64: #{bert_wrapper_forward.2} parent=31 // pred_fallthru
        _
      // Predicated region
      $region65: #{bert_wrapper_forward.2} parent=31 // pred_check
        %p524 = pneg %p334
      $region66: #{bert_wrapper_forward.2} parent=31 // pred_check_branch
        %526 = sbr.rel (%p524) target = $region68
      $region67: #{bert_wrapper_forward.2} parent=31 // pred_region
        %p527 = scmp.lt.s32.totalorder %s22, 1
        %s528 = scalar_select %p527, %s22, 1
        %s529 = smul.addr %s528, 8
        %s530 = smul.addr %s529, 4
        %s531 = scalar_lea.vmem %s12, %s530
      $region68: #{bert_wrapper_forward.2} parent=31 // pred_fallthru
        _
      // Predicated region
      $region69: #{bert_wrapper_forward.2} parent=31 // pred_check
        %p532 = pneg %p360
      $region70: #{bert_wrapper_forward.2} parent=31 // pred_check_branch
        %534 = sbr.rel (%p532) target = $region72
      $region71: #{bert_wrapper_forward.2} parent=31 // pred_region
        %p535 = scmp.lt.s32.totalorder %s22, 1
        %s536 = scalar_select %p535, %s22, 1
        %s537 = scalar_lea.vmem %s13, %s536
      $region72: #{bert_wrapper_forward.2} parent=31 // pred_fallthru
        _
      // Predicated region
      $region73: #{bert_wrapper_forward.2} parent=31 // pred_check
        %p538 = pneg %p386
      $region74: #{bert_wrapper_forward.2} parent=31 // pred_check_branch
        %540 = sbr.rel (%p538) target = $region76
      $region75: #{bert_wrapper_forward.2} parent=31 // pred_region
        %p541 = scmp.lt.s32.totalorder %s22, 1
        %s542 = scalar_select %p541, %s22, 1
        %s543 = scalar_lea.vmem %s14, %s542
      $region76: #{bert_wrapper_forward.2} parent=31 // pred_fallthru
        _
      // Predicated region
      $region77: #{bert_wrapper_forward.2} parent=31 // pred_check
        %p544 = pneg %p412
      $region78: #{bert_wrapper_forward.2} parent=31 // pred_check_branch
        %546 = sbr.rel (%p544) target = $region80
      $region79: #{bert_wrapper_forward.2} parent=31 // pred_region
        %p547 = scmp.lt.s32.totalorder %s22, 1
        %s548 = scalar_select %p547, %s22, 1
        %s549 = scalar_lea.vmem %s15, %s548
      $region80: #{bert_wrapper_forward.2} parent=31 // pred_fallthru
        _
    $region32: #{bert_wrapper_forward.2} parent=5 // pred_fallthru
      _
    %p550 = scmp.le.s32.totalorder 1, %s22
    %p551 = scmp.lt.s32.totalorder %s22, 3
    %p552 = pnand %p550, %p551
    %p553 = pneg %p552
    // Predicated region
    $region81: #{bert_wrapper_forward.2} parent=5 // pred_check
      _
    $region82: #{bert_wrapper_forward.2} parent=5 // pred_check_branch
      %555 = sbr.rel (%p552) target = $region84
    $region83: #{bert_wrapper_forward.2} parent=5 // pred_region
      %s556 = ssub.s32 %s22, 1
      %p557 = pneg %p43
      %p558 = pneg %p40
      %p559 = pneg %p64
      %p560 = pneg %p61
      %p561 = pneg %p85
      %p562 = pneg %p82
      %p563 = pneg %p106
      %p564 = pneg %p103
      %p565 = scmp.lt.s32.totalorder %s27, 1
      %s566 = scalar_select %p565, %s27, 1
      %s567 = smul.addr %s566, 4
      %s568 = smul.addr %s567, 4
      %s569 = scalar_lea.vmem %s4, %s568
      %p570 = pneg %p132
      %p571 = pneg %p129
      %p572 = scmp.lt.s32.totalorder %s27, 1
      %s573 = scalar_select %p572, %s27, 1
      %s574 = scalar_lea.vmem %s5, %s573
      %p575 = pneg %p158
      %p576 = pneg %p155
      %p577 = scmp.lt.s32.totalorder %s27, 1
      %s578 = scalar_select %p577, %s27, 1
      %s579 = smul.addr %s578, 4
      %s580 = smul.addr %s579, 4
      %s581 = scalar_lea.vmem %s6, %s580
      %p582 = pneg %p184
      %p583 = pneg %p181
      %p584 = scmp.lt.s32.totalorder %s27, 1
      %s585 = scalar_select %p584, %s27, 1
      %s586 = scalar_lea.vmem %s7, %s585
      %p587 = pneg %p210
      %p588 = pneg %p207
      %p589 = scmp.lt.s32.totalorder %s27, 1
      %s590 = scalar_select %p589, %s27, 1
      %s591 = scalar_lea.vmem %s8, %s590
      %p592 = pneg %p236
      %p593 = pneg %p233
      %p594 = scmp.lt.s32.totalorder %s27, 1
      %s595 = scalar_select %p594, %s27, 1
      %s596 = scalar_lea.vmem %s9, %s595
      %p597 = pneg %p262
      %p598 = pneg %p259
      %p599 = scmp.lt.s32.totalorder %s27, 1
      %s600 = scalar_select %p599, %s27, 1
      %s601 = smul.addr %s600, 4
      %s602 = smul.addr %s601, 4
      %s603 = scalar_lea.vmem %s10, %s602
      %p604 = pneg %p288
      %p605 = pneg %p285
      %p606 = scmp.lt.s32.totalorder %s27, 1
      %s607 = scalar_select %p606, %s27, 1
      %s608 = scalar_lea.vmem %s11, %s607
      %p609 = pneg %p314
      %p610 = pneg %p311
      %p611 = scmp.lt.s32.totalorder %s27, 1
      %s612 = scalar_select %p611, %s27, 1
      %s613 = smul.addr %s612, 8
      %s614 = smul.addr %s613, 4
      %s615 = scalar_lea.vmem %s12, %s614
      %p616 = pneg %p340
      %p617 = pneg %p337
      %p618 = scmp.lt.s32.totalorder %s27, 1
      %s619 = scalar_select %p618, %s27, 1
      %s620 = scalar_lea.vmem %s13, %s619
      %p621 = pneg %p366
      %p622 = pneg %p363
      %p623 = scmp.lt.s32.totalorder %s27, 1
      %s624 = scalar_select %p623, %s27, 1
      %s625 = scalar_lea.vmem %s14, %s624
      %p626 = pneg %p392
      %p627 = pneg %p389
      %p628 = scmp.lt.s32.totalorder %s27, 1
      %s629 = scalar_select %p628, %s27, 1
      %s630 = scalar_lea.vmem %s15, %s629
      %p631 = pneg %p418
      %p632 = pneg %p415
      %p633 = pneg %p439
      %p634 = pneg %p436
      %p635 = scmp.lt.s32.totalorder %s27, 1
      %s636 = scalar_select %p635, %s27, 1
      %s637 = smul.addr %s636, 4
      %s638 = smul.addr %s637, 4
      %s639 = scalar_lea.vmem %s4, %s638
      %p640 = scmp.lt.s32.totalorder %s27, 1
      %s641 = scalar_select %p640, %s27, 1
      %s642 = scalar_lea.vmem %s5, %s641
      %p643 = scmp.lt.s32.totalorder %s27, 1
      %s644 = scalar_select %p643, %s27, 1
      %s645 = smul.addr %s644, 4
      %s646 = smul.addr %s645, 4
      %s647 = scalar_lea.vmem %s6, %s646
      %p648 = scmp.lt.s32.totalorder %s27, 1
      %s649 = scalar_select %p648, %s27, 1
      %s650 = scalar_lea.vmem %s7, %s649
      %p651 = scmp.lt.s32.totalorder %s27, 1
      %s652 = scalar_select %p651, %s27, 1
      %s653 = scalar_lea.vmem %s8, %s652
      %p654 = scmp.lt.s32.totalorder %s27, 1
      %s655 = scalar_select %p654, %s27, 1
      %s656 = scalar_lea.vmem %s9, %s655
      %p657 = scmp.lt.s32.totalorder %s27, 1
      %s658 = scalar_select %p657, %s27, 1
      %s659 = smul.addr %s658, 4
      %s660 = smul.addr %s659, 4
      %s661 = scalar_lea.vmem %s10, %s660
      %p662 = scmp.lt.s32.totalorder %s27, 1
      %s663 = scalar_select %p662, %s27, 1
      %s664 = scalar_lea.vmem %s11, %s663
      %p665 = scmp.lt.s32.totalorder %s27, 1
      %s666 = scalar_select %p665, %s27, 1
      %s667 = smul.addr %s666, 8
      %s668 = smul.addr %s667, 4
      %s669 = scalar_lea.vmem %s12, %s668
      %p670 = scmp.lt.s32.totalorder %s27, 1
      %s671 = scalar_select %p670, %s27, 1
      %s672 = scalar_lea.vmem %s13, %s671
      %p673 = scmp.lt.s32.totalorder %s27, 1
      %s674 = scalar_select %p673, %s27, 1
      %s675 = scalar_lea.vmem %s14, %s674
      %p676 = scmp.lt.s32.totalorder %s27, 1
      %s677 = scalar_select %p676, %s27, 1
      %s678 = scalar_lea.vmem %s15, %s677
      %p680 = scmp.eq.s32.totalorder %s27, 0
      // Predicated region
      $region85: #{bert_wrapper_forward.2} parent=83 // pred_check
        %p681 = pneg %p680
      $region86: #{bert_wrapper_forward.2} parent=83 // pred_check_branch
        %683 = sbr.rel (%p681) target = $region88
      $region87: #{bert_wrapper_forward.2} parent=83 // pred_region
        %v684 = vld [vmem:[%s0] sm:$0xff]
        %v685 = vld [vmem:[%s0 + $0x8] sm:$0xff]
        %v686 = vld [vmem:[%s2] sm:$0x1]
        %v687 = vld [vmem:[%s3] sm:$0x1]
        %vm688 = vcmask 261120
        %v689 = vsel %vm688, %v684, 0.0
        %690 = vadd.xlane.f32.xlu0 %v689
        %v691 = vpop.xlane.xlu0 %690
        %v692 = vsel %vm688, %v685, 0.0
        %693 = vadd.xlane.f32.xlu0 %v692
        %v694 = vpop.xlane.xlu0 %693
        %v695 = vrcp.pop 32.0
        %v696 = vmul.f32 32.0, %v695
        %v697 = vsub.f32 1.0, %v696
        %v698 = vmul.f32 %v695, %v697
        %v699 = vadd.f32 %v695, %v698
        %vm700 = vweird.f32 %v695
        %v701 = vsel %vm700, %v695, %v699
        %v702 = vmul.f32 %v691, %v701
        %v703 = vmul.f32 %v694, %v701
        %v704 = vsub.f32 %v684, %v702
        %v705 = vsub.f32 %v685, %v703
        %v706 = vmul.f32 %v704, %v704
        %v707 = vmul.f32 %v705, %v705
        %v708 = vsel %vm688, %v706, 0.0
        %709 = vadd.xlane.f32.xlu0 %v708
        %v710 = vpop.xlane.xlu0 %709
        %v711 = vsel %vm688, %v707, 0.0
        %712 = vadd.xlane.f32.xlu0 %v711
        %v713 = vpop.xlane.xlu0 %712
        %v714 = vmul.f32 %v710, %v701
        %v715 = vmul.f32 %v713, %v701
        %v716 = vadd.f32 %v714, 1e-12
        %v717 = vadd.f32 %v715, 1e-12
        %v718 = vrsqrt.pop %v716
        %v719 = vmul.f32 %v718, %v716
        %v720 = vmul.f32 %v719, %v718
        %v721 = vmul.f32 0.5, %v720
        %v722 = vsub.f32 1.5, %v721
        %v723 = vmul.f32 %v718, %v722
        %vm724 = vweird.f32 %v716
        %vm725 = vweird.f32 %v718
        %vm726 = vmor %vm724, %vm725
        %v727 = vsel %vm726, %v718, %v723
        %v728 = vrsqrt.pop %v717
        %v729 = vmul.f32 %v728, %v717
        %v730 = vmul.f32 %v729, %v728
        %v731 = vmul.f32 0.5, %v730
        %v732 = vsub.f32 1.5, %v731
        %v733 = vmul.f32 %v728, %v732
        %vm734 = vweird.f32 %v717
        %vm735 = vweird.f32 %v728
        %vm736 = vmor %vm734, %vm735
        %v737 = vsel %vm736, %v728, %v733
        %v738 = vmul.f32 %v704, %v727
        %v739 = vmul.f32 %v705, %v737
        %v741 = vperm.slane %v686, 0
        %v743 = vmul.f32 %v738, %v741
        %v744 = vmul.f32 %v739, %v741
        %v746 = vperm.slane %v687, 0
        %v748 = vadd.f32 %v743, %v746
        %v749 = vadd.f32 %v744, %v746
        %750 = vst.msk [vmem:[#allocation2] sm:$0xff] %vm688, %v748
        %751 = vst.msk [vmem:[#allocation2 + $0x8] sm:$0xff] %vm688, %v749
      $region88: #{bert_wrapper_forward.2} parent=83 // pred_fallthru
        _
      %v752 = vld [vmem:[#allocation2] sm:$0xff]
      %v753 = vld [vmem:[#allocation2 + $0x8] sm:$0xff]
      %v754 = vpack.c.bf16 %v753, %v752
      %v755 = vld [vmem:[%s639] sm:$0xf]
      %v756 = vld [vmem:[%s639 + $0x4] sm:$0xf]
      %v757 = vld [vmem:[%s639 + $0x8] sm:$0xf]
      %v758 = vld [vmem:[%s639 + $0xc] sm:$0xf]
      %v759 = vld [vmem:[%s642] sm:$0x1]
      %v761 = vperm.slane %v759, 0
      %v767 = vunpack.c.l.b16 %v755
      %v768 = vunpack.c.l.b16 %v756
      %v769 = vunpack.c.l.b16 %v757
      %v770 = vunpack.c.l.b16 %v758
      %v771 = vpack.c.b16 %v768, %v767
      %v772 = vpack.c.b16 %v770, %v769
      %vm775 = vcmask 261120
      %v777 = vsel %vm775, %v754, 0
      %779 = vmatpush.bf16.msra.mxu0 0
      %780 = vmatpush.bf16.msra.mxu0 0
      %781 = vmatpush.bf16.msra.mxu0 0
      %782 = vmatpush.bf16.msra.mxu0 0
      %783 = vmatpush.bf16.msra.mxu0 0
      %784 = vmatpush.bf16.msra.mxu0 0
      %785 = vmatpush.bf16.msra.mxu0 %v772
      %786 = vmatpush.bf16.msra.mxu0 %v771
      %787 = vmatmul.bf16.gmra.mxu0 %v777
      %v788 = vpop.f32.mrf.mxu0
      %v789 = vadd.f32 %v761, %v788
      %v790 = vpop.f32.mrf.mxu0
      %v791 = vadd.f32 %v761, %v790
      %792 = vdwg.mxu0
      %v793 = vld [vmem:[%s1] sm:$0x1]
      %v794 = vld [vmem:[%s1 + $0x1] sm:$0x1]
      %v795 = vld [vmem:[%s647] sm:$0xf]
      %v796 = vld [vmem:[%s647 + $0x4] sm:$0xf]
      %v797 = vld [vmem:[%s647 + $0x8] sm:$0xf]
      %v798 = vld [vmem:[%s647 + $0xc] sm:$0xf]
      %v799 = vld [vmem:[%s650] sm:$0x1]
      %v800 = vpack.c.bf16 %v789, %v789
      %v801 = vpack.c.bf16 %v791, %v791
      %v803 = vunpack.c.l.b16 %v800
      %v804 = vpack.c.b16 %v803, %v803
      %805 = vrot.lane.b32.xlu0 %v804, 96
      %v806 = vpop.permute.xlu0 %805
      %vm807 = vcmask 130048
      %v809 = vsel %vm807, %v800, 0
      %v812 = vsel %vm807, %v806, 0
      %814 = vmatpush.bf16.xpose.msra.mxu0 0
      %815 = vmatpush.bf16.xpose.msra.mxu0 0
      %816 = vmatpush.bf16.xpose.msra.mxu0 0
      %817 = vmatpush.bf16.xpose.msra.mxu0 0
      %818 = vmatpush.bf16.xpose.msra.mxu0 0
      %819 = vmatpush.bf16.xpose.msra.mxu0 0
      %820 = vmatpush.bf16.xpose.msra.mxu0 0
      %821 = vmatpush.bf16.xpose.msra.mxu0 %v812
      %822 = vmatmul.bf16.gmra.mxu0 %v809
      %v823 = vpop.f32.mrf.mxu0
      %v824 = vadd.f32 0.0, %v823
      %v825 = vpop.f32.mrf.mxu0
      %826 = vdwg.mxu0
      %v828 = vunpack.c.l.b16 %v801
      %v829 = vpack.c.b16 %v828, %v828
      %830 = vrot.lane.b32.xlu0 %v829, 96
      %v831 = vpop.permute.xlu0 %830
      %v833 = vsel %vm807, %v801, 0
      %v836 = vsel %vm807, %v831, 0
      %838 = vmatpush.bf16.xpose.msra.mxu0 0
      %839 = vmatpush.bf16.xpose.msra.mxu0 0
      %840 = vmatpush.bf16.xpose.msra.mxu0 0
      %841 = vmatpush.bf16.xpose.msra.mxu0 0
      %842 = vmatpush.bf16.xpose.msra.mxu0 0
      %843 = vmatpush.bf16.xpose.msra.mxu0 0
      %844 = vmatpush.bf16.xpose.msra.mxu0 0
      %845 = vmatpush.bf16.xpose.msra.mxu0 %v836
      %846 = vmatmul.bf16.gmra.mxu0 %v833
      %v847 = vpop.f32.mrf.mxu0
      %v848 = vadd.f32 0.0, %v847
      %v849 = vpop.f32.mrf.mxu0
      %850 = vdwg.mxu0
      %v851 = vmul.f32 %v824, 0.25
      %v852 = vmul.f32 %v848, 0.25
      %v855 = vperm.slane %v793, 0
      %v856 = vperm.slane %v794, 0
      %v859 = vadd.f32 %v851, %v855
      %v860 = vadd.f32 %v852, %v856
      %vm861 = vcmask 64512
      %v862 = vsel %vm861, %v859, -inf
      %863 = vmax.xlane.f32.xlu0 %v862
      %v864 = vpop.xlane.xlu0 %863
      %v865 = vsel %vm861, %v860, -inf
      %866 = vmax.xlane.f32.xlu0 %v865
      %v867 = vpop.xlane.xlu0 %866
      %v868 = vsub.f32 %v859, %v864
      %v869 = vsub.f32 %v860, %v867
      %v870 = vmul.f32 %v868, 1.442695
      %v871 = vpow.pop %v870
      %v872 = vmul.f32 %v869, 1.442695
      %v873 = vpow.pop %v872
      %v874 = vsel %vm861, %v871, 0.0
      %875 = vadd.xlane.f32.xlu0 %v874
      %v876 = vpop.xlane.xlu0 %875
      %v877 = vsel %vm861, %v873, 0.0
      %878 = vadd.xlane.f32.xlu0 %v877
      %v879 = vpop.xlane.xlu0 %878
      %v880 = vrcp.pop %v876
      %v881 = vrcp.pop %v879
      %v882 = vmul.f32 %v871, %v880
      %v883 = vmul.f32 %v873, %v881
      %v884 = vpack.c.bf16 %v882, %v882
      %v885 = vpack.c.bf16 %v883, %v883
      %886 = vrot.lane.b32.xlu0 %v804, 64
      %v887 = vpop.permute.xlu0 %886
      %v889 = vsel %vm861, %v884, 0
      %vm891 = vcmask 1043456
      %v893 = vsel %vm891, %v887, 0
      %895 = vmatpush.bf16.msra.mxu0 0
      %896 = vmatpush.bf16.msra.mxu0 0
      %897 = vmatpush.bf16.msra.mxu0 0
      %898 = vmatpush.bf16.msra.mxu0 0
      %899 = vmatpush.bf16.msra.mxu0 0
      %900 = vmatpush.bf16.msra.mxu0 0
      %901 = vmatpush.bf16.msra.mxu0 0
      %902 = vmatpush.bf16.msra.mxu0 %v893
      %903 = vmatmul.bf16.gmra.mxu0 %v889
      %v904 = vpop.f32.mrf.mxu0
      %v905 = vadd.f32 0.0, %v904
      %v906 = vpop.f32.mrf.mxu0
      %907 = vdwg.mxu0
      %908 = vrot.lane.b32.xlu0 %v829, 64
      %v909 = vpop.permute.xlu0 %908
      %v911 = vsel %vm861, %v885, 0
      %v914 = vsel %vm891, %v909, 0
      %916 = vmatpush.bf16.msra.mxu0 0
      %917 = vmatpush.bf16.msra.mxu0 0
      %918 = vmatpush.bf16.msra.mxu0 0
      %919 = vmatpush.bf16.msra.mxu0 0
      %920 = vmatpush.bf16.msra.mxu0 0
      %921 = vmatpush.bf16.msra.mxu0 0
      %922 = vmatpush.bf16.msra.mxu0 0
      %923 = vmatpush.bf16.msra.mxu0 %v914
      %924 = vmatmul.bf16.gmra.mxu0 %v911
      %v925 = vpop.f32.mrf.mxu0
      %v926 = vadd.f32 0.0, %v925
      %v927 = vpop.f32.mrf.mxu0
      %928 = vdwg.mxu0
      %v929 = vpack.c.bf16 %v926, %v905
      %v932 = vunpack.c.l.b16 %v795
      %v933 = vunpack.c.l.b16 %v796
      %v934 = vpack.c.b16 %v933, %v932
      %v937 = vsel %vm807, %v929, 0
      %939 = vmatpush.bf16.msra.mxu0 0
      %940 = vmatpush.bf16.msra.mxu0 0
      %941 = vmatpush.bf16.msra.mxu0 0
      %942 = vmatpush.bf16.msra.mxu0 0
      %943 = vmatpush.bf16.msra.mxu0 0
      %944 = vmatpush.bf16.msra.mxu0 0
      %945 = vmatpush.bf16.msra.mxu0 0
      %946 = vmatpush.bf16.msra.mxu0 %v934
      %947 = vmatmul.bf16.gmra.mxu0 %v937
      %v948 = vpop.f32.mrf.mxu0
      %v949 = vadd.f32 0.0, %v948
      %v950 = vpop.f32.mrf.mxu0
      %v951 = vadd.f32 0.0, %v950
      %952 = vdwg.mxu0
      %v954 = vperm.slane %v799, 0
      %v956 = vadd.f32 %v954, %v949
      %v957 = vadd.f32 %v954, %v951
      %958 = vrot.lane.b32.xlu0 %v804, 112
      %v959 = vpop.permute.xlu0 %958
      %960 = vrot.lane.b32.xlu0 %v804, 80
      %v961 = vpop.permute.xlu0 %960
      %v963 = vsel %vm807, %v959, 0
      %v966 = vsel %vm807, %v961, 0
      %968 = vmatpush.bf16.xpose.msra.mxu0 0
      %969 = vmatpush.bf16.xpose.msra.mxu0 0
      %970 = vmatpush.bf16.xpose.msra.mxu0 0
      %971 = vmatpush.bf16.xpose.msra.mxu0 0
      %972 = vmatpush.bf16.xpose.msra.mxu0 0
      %973 = vmatpush.bf16.xpose.msra.mxu0 0
      %974 = vmatpush.bf16.xpose.msra.mxu0 0
      %975 = vmatpush.bf16.xpose.msra.mxu0 %v966
      %976 = vmatmul.bf16.gmra.mxu0 %v963
      %v977 = vpop.f32.mrf.mxu0
      %v978 = vadd.f32 0.0, %v977
      %v979 = vpop.f32.mrf.mxu0
      %980 = vdwg.mxu0
      %981 = vrot.lane.b32.xlu0 %v829, 112
      %v982 = vpop.permute.xlu0 %981
      %983 = vrot.lane.b32.xlu0 %v829, 80
      %v984 = vpop.permute.xlu0 %983
      %v986 = vsel %vm807, %v982, 0
      %v989 = vsel %vm807, %v984, 0
      %991 = vmatpush.bf16.xpose.msra.mxu0 0
      %992 = vmatpush.bf16.xpose.msra.mxu0 0
      %993 = vmatpush.bf16.xpose.msra.mxu0 0
      %994 = vmatpush.bf16.xpose.msra.mxu0 0
      %995 = vmatpush.bf16.xpose.msra.mxu0 0
      %996 = vmatpush.bf16.xpose.msra.mxu0 0
      %997 = vmatpush.bf16.xpose.msra.mxu0 0
      %998 = vmatpush.bf16.xpose.msra.mxu0 %v989
      %999 = vmatmul.bf16.gmra.mxu0 %v986
      %v1000 = vpop.f32.mrf.mxu0
      %v1001 = vadd.f32 0.0, %v1000
      %v1002 = vpop.f32.mrf.mxu0
      %1003 = vdwg.mxu0
      %v1004 = vmul.f32 %v978, 0.25
      %v1005 = vmul.f32 %v1001, 0.25
      %v1006 = vadd.f32 %v1004, %v855
      %v1007 = vadd.f32 %v1005, %v856
      %v1008 = vsel %vm861, %v1006, -inf
      %1009 = vmax.xlane.f32.xlu0 %v1008
      %v1010 = vpop.xlane.xlu0 %1009
      %v1011 = vsel %vm861, %v1007, -inf
      %1012 = vmax.xlane.f32.xlu0 %v1011
      %v1013 = vpop.xlane.xlu0 %1012
      %v1014 = vsub.f32 %v1006, %v1010
      %v1015 = vsub.f32 %v1007, %v1013
      %v1016 = vmul.f32 %v1014, 1.442695
      %v1017 = vpow.pop %v1016
      %v1018 = vmul.f32 %v1015, 1.442695
      %v1019 = vpow.pop %v1018
      %v1020 = vsel %vm861, %v1017, 0.0
      %1021 = vadd.xlane.f32.xlu0 %v1020
      %v1022 = vpop.xlane.xlu0 %1021
      %v1023 = vsel %vm861, %v1019, 0.0
      %1024 = vadd.xlane.f32.xlu0 %v1023
      %v1025 = vpop.xlane.xlu0 %1024
      %v1026 = vrcp.pop %v1022
      %v1027 = vrcp.pop %v1025
      %v1028 = vmul.f32 %v1017, %v1026
      %v1029 = vmul.f32 %v1019, %v1027
      %v1030 = vpack.c.bf16 %v1028, %v1028
      %v1031 = vpack.c.bf16 %v1029, %v1029
      %1032 = vrot.lane.b32.xlu0 %v804, 48
      %v1033 = vpop.permute.xlu0 %1032
      %v1035 = vsel %vm861, %v1030, 0
      %v1038 = vsel %vm891, %v1033, 0
      %1040 = vmatpush.bf16.msra.mxu0 0
      %1041 = vmatpush.bf16.msra.mxu0 0
      %1042 = vmatpush.bf16.msra.mxu0 0
      %1043 = vmatpush.bf16.msra.mxu0 0
      %1044 = vmatpush.bf16.msra.mxu0 0
      %1045 = vmatpush.bf16.msra.mxu0 0
      %1046 = vmatpush.bf16.msra.mxu0 0
      %1047 = vmatpush.bf16.msra.mxu0 %v1038
      %1048 = vmatmul.bf16.gmra.mxu0 %v1035
      %v1049 = vpop.f32.mrf.mxu0
      %v1050 = vadd.f32 0.0, %v1049
      %v1051 = vpop.f32.mrf.mxu0
      %1052 = vdwg.mxu0
      %1053 = vrot.lane.b32.xlu0 %v829, 48
      %v1054 = vpop.permute.xlu0 %1053
      %v1056 = vsel %vm861, %v1031, 0
      %v1059 = vsel %vm891, %v1054, 0
      %1061 = vmatpush.bf16.msra.mxu0 0
      %1062 = vmatpush.bf16.msra.mxu0 0
      %1063 = vmatpush.bf16.msra.mxu0 0
      %1064 = vmatpush.bf16.msra.mxu0 0
      %1065 = vmatpush.bf16.msra.mxu0 0
      %1066 = vmatpush.bf16.msra.mxu0 0
      %1067 = vmatpush.bf16.msra.mxu0 0
      %1068 = vmatpush.bf16.msra.mxu0 %v1059
      %1069 = vmatmul.bf16.gmra.mxu0 %v1056
      %v1070 = vpop.f32.mrf.mxu0
      %v1071 = vadd.f32 0.0, %v1070
      %v1072 = vpop.f32.mrf.mxu0
      %1073 = vdwg.mxu0
      %v1074 = vpack.c.bf16 %v1071, %v1050
      %v1077 = vunpack.c.l.b16 %v797
      %v1078 = vunpack.c.l.b16 %v798
      %v1079 = vpack.c.b16 %v1078, %v1077
      %v1082 = vsel %vm807, %v1074, 0
      %1084 = vmatpush.bf16.msra.mxu0 0
      %1085 = vmatpush.bf16.msra.mxu0 0
      %1086 = vmatpush.bf16.msra.mxu0 0
      %1087 = vmatpush.bf16.msra.mxu0 0
      %1088 = vmatpush.bf16.msra.mxu0 0
      %1089 = vmatpush.bf16.msra.mxu0 0
      %1090 = vmatpush.bf16.msra.mxu0 0
      %1091 = vmatpush.bf16.msra.mxu0 %v1079
      %1092 = vmatmul.bf16.gmra.mxu0 %v1082
      %v1093 = vpop.f32.mrf.mxu0
      %v1094 = vadd.f32 0.0, %v1093
      %v1095 = vpop.f32.mrf.mxu0
      %v1096 = vadd.f32 0.0, %v1095
      %1097 = vdwg.mxu0
      %v1098 = vadd.f32 %v956, %v1094
      %v1099 = vadd.f32 %v957, %v1096
      %v1100 = vadd.f32 %v1098, %v752
      %v1101 = vadd.f32 %v1099, %v753
      %v1102 = vld [vmem:[%s653] sm:$0x1]
      %v1103 = vld [vmem:[%s656] sm:$0x1]
      %v1104 = vsel %vm775, %v1100, 0.0
      %1105 = vadd.xlane.f32.xlu0 %v1104
      %v1106 = vpop.xlane.xlu0 %1105
      %v1107 = vsel %vm775, %v1101, 0.0
      %1108 = vadd.xlane.f32.xlu0 %v1107
      %v1109 = vpop.xlane.xlu0 %1108
      %v1110 = vrcp.pop 32.0
      %v1111 = vmul.f32 32.0, %v1110
      %v1112 = vsub.f32 1.0, %v1111
      %v1113 = vmul.f32 %v1110, %v1112
      %v1114 = vadd.f32 %v1110, %v1113
      %vm1115 = vweird.f32 %v1110
      %v1116 = vsel %vm1115, %v1110, %v1114
      %v1117 = vmul.f32 %v1106, %v1116
      %v1118 = vmul.f32 %v1109, %v1116
      %v1119 = vsub.f32 %v1100, %v1117
      %v1120 = vsub.f32 %v1101, %v1118
      %v1121 = vmul.f32 %v1119, %v1119
      %v1122 = vmul.f32 %v1120, %v1120
      %v1123 = vsel %vm775, %v1121, 0.0
      %1124 = vadd.xlane.f32.xlu0 %v1123
      %v1125 = vpop.xlane.xlu0 %1124
      %v1126 = vsel %vm775, %v1122, 0.0
      %1127 = vadd.xlane.f32.xlu0 %v1126
      %v1128 = vpop.xlane.xlu0 %1127
      %v1129 = vmul.f32 %v1125, %v1116
      %v1130 = vmul.f32 %v1128, %v1116
      %v1131 = vadd.f32 %v1129, 1e-12
      %v1132 = vadd.f32 %v1130, 1e-12
      %v1133 = vrsqrt.pop %v1131
      %v1134 = vmul.f32 %v1133, %v1131
      %v1135 = vmul.f32 %v1134, %v1133
      %v1136 = vmul.f32 0.5, %v1135
      %v1137 = vsub.f32 1.5, %v1136
      %v1138 = vmul.f32 %v1133, %v1137
      %vm1139 = vweird.f32 %v1131
      %vm1140 = vweird.f32 %v1133
      %vm1141 = vmor %vm1139, %vm1140
      %v1142 = vsel %vm1141, %v1133, %v1138
      %v1143 = vrsqrt.pop %v1132
      %v1144 = vmul.f32 %v1143, %v1132
      %v1145 = vmul.f32 %v1144, %v1143
      %v1146 = vmul.f32 0.5, %v1145
      %v1147 = vsub.f32 1.5, %v1146
      %v1148 = vmul.f32 %v1143, %v1147
      %vm1149 = vweird.f32 %v1132
      %vm1150 = vweird.f32 %v1143
      %vm1151 = vmor %vm1149, %vm1150
      %v1152 = vsel %vm1151, %v1143, %v1148
      %v1153 = vmul.f32 %v1119, %v1142
      %v1154 = vmul.f32 %v1120, %v1152
      %v1156 = vperm.slane %v1102, 0
      %v1158 = vmul.f32 %v1153, %v1156
      %v1159 = vmul.f32 %v1154, %v1156
      %v1161 = vperm.slane %v1103, 0
      %v1163 = vadd.f32 %v1158, %v1161
      %v1164 = vadd.f32 %v1159, %v1161
      %v1165 = vpack.c.bf16 %v1164, %v1163
      %v1166 = vld [vmem:[%s661] sm:$0xf]
      %v1167 = vld [vmem:[%s661 + $0x4] sm:$0xf]
      %v1168 = vld [vmem:[%s661 + $0x8] sm:$0xf]
      %v1169 = vld [vmem:[%s661 + $0xc] sm:$0xf]
      %v1170 = vld [vmem:[%s664] sm:$0x1]
      %v1172 = vperm.slane %v1170, 0
      %v1178 = vunpack.c.l.b16 %v1166
      %v1179 = vunpack.c.l.b16 %v1167
      %v1180 = vunpack.c.l.b16 %v1168
      %v1181 = vunpack.c.l.b16 %v1169
      %v1182 = vpack.c.b16 %v1179, %v1178
      %v1183 = vpack.c.b16 %v1181, %v1180
      %v1187 = vsel %vm775, %v1165, 0
      %1189 = vmatpush.bf16.msra.mxu0 0
      %1190 = vmatpush.bf16.msra.mxu0 0
      %1191 = vmatpush.bf16.msra.mxu0 0
      %1192 = vmatpush.bf16.msra.mxu0 0
      %1193 = vmatpush.bf16.msra.mxu0 0
      %1194 = vmatpush.bf16.msra.mxu0 0
      %1195 = vmatpush.bf16.msra.mxu0 %v1183
      %1196 = vmatpush.bf16.msra.mxu0 %v1182
      %1197 = vmatmul.bf16.gmra.mxu0 %v1187
      %v1198 = vpop.f32.mrf.mxu0
      %v1199 = vadd.f32 %v1172, %v1198
      %v1200 = vpop.f32.mrf.mxu0
      %v1201 = vadd.f32 %v1172, %v1200
      %1202 = vdwg.mxu0
      %v1203 = vmul.f32 %v1199, 0.5
      %v1204 = vmul.f32 %v1201, 0.5
      %v1205 = vmul.f32 %v1199, 0.044715
      %v1206 = vmul.f32 %v1201, 0.044715
      %v1207 = vmul.f32 %v1205, %v1199
      %v1208 = vmul.f32 %v1206, %v1201
      %v1209 = vmul.f32 %v1207, %v1199
      %v1210 = vmul.f32 %v1208, %v1201
      %v1211 = vadd.f32 %v1199, %v1209
      %v1212 = vadd.f32 %v1201, %v1210
      %v1213 = vmul.f32 %v1211, 0.7978846
      %v1214 = vmul.f32 %v1212, 0.7978846
      %v1215 = vtanh.pop %v1213
      %v1216 = vtanh.pop %v1214
      %v1217 = vadd.f32 %v1215, 1.0
      %v1218 = vadd.f32 %v1216, 1.0
      %v1219 = vmul.f32 %v1203, %v1217
      %v1220 = vmul.f32 %v1204, %v1218
      %v1221 = vpack.c.bf16 %v1220, %v1219
      %v1222 = vld [vmem:[%s669] sm:$0xf]
      %v1223 = vld [vmem:[%s669 + $0x4] sm:$0xf]
      %v1224 = vld [vmem:[%s669 + $0x8] sm:$0xf]
      %v1225 = vld [vmem:[%s669 + $0xc] sm:$0xf]
      %v1226 = vld [vmem:[%s669 + $0x10] sm:$0xf]
      %v1227 = vld [vmem:[%s669 + $0x14] sm:$0xf]
      %v1228 = vld [vmem:[%s669 + $0x18] sm:$0xf]
      %v1229 = vld [vmem:[%s669 + $0x1c] sm:$0xf]
      %v1230 = vld [vmem:[%s672] sm:$0x1]
      %v1232 = vperm.slane %v1230, 0
      %v1242 = vunpack.c.l.b16 %v1222
      %v1243 = vunpack.c.l.b16 %v1223
      %v1244 = vunpack.c.l.b16 %v1224
      %v1245 = vunpack.c.l.b16 %v1225
      %v1246 = vunpack.c.l.b16 %v1226
      %v1247 = vunpack.c.l.b16 %v1227
      %v1248 = vunpack.c.l.b16 %v1228
      %v1249 = vunpack.c.l.b16 %v1229
      %v1250 = vpack.c.b16 %v1243, %v1242
      %v1251 = vpack.c.b16 %v1245, %v1244
      %v1252 = vpack.c.b16 %v1247, %v1246
      %v1253 = vpack.c.b16 %v1249, %v1248
      %vm1258 = vcmask 523264
      %v1260 = vsel %vm1258, %v1221, 0
      %1262 = vmatpush.bf16.msra.mxu0 0
      %1263 = vmatpush.bf16.msra.mxu0 0
      %1264 = vmatpush.bf16.msra.mxu0 0
      %1265 = vmatpush.bf16.msra.mxu0 0
      %1266 = vmatpush.bf16.msra.mxu0 %v1253
      %1267 = vmatpush.bf16.msra.mxu0 %v1252
      %1268 = vmatpush.bf16.msra.mxu0 %v1251
      %1269 = vmatpush.bf16.msra.mxu0 %v1250
      %1270 = vmatmul.bf16.gmra.mxu0 %v1260
      %v1271 = vpop.f32.mrf.mxu0
      %v1272 = vadd.f32 %v1232, %v1271
      %v1273 = vpop.f32.mrf.mxu0
      %v1274 = vadd.f32 %v1232, %v1273
      %1275 = vdwg.mxu0
      %v1276 = vadd.f32 %v1272, %v1163
      %v1277 = vadd.f32 %v1274, %v1164
      %v1278 = vld [vmem:[%s675] sm:$0x1]
      %v1279 = vld [vmem:[%s678] sm:$0x1]
      %v1280 = vsel %vm775, %v1276, 0.0
      %1281 = vadd.xlane.f32.xlu0 %v1280
      %v1282 = vpop.xlane.xlu0 %1281
      %v1283 = vsel %vm775, %v1277, 0.0
      %1284 = vadd.xlane.f32.xlu0 %v1283
      %v1285 = vpop.xlane.xlu0 %1284
      %v1286 = vmul.f32 %v1282, %v1116
      %v1287 = vmul.f32 %v1285, %v1116
      %v1288 = vsub.f32 %v1276, %v1286
      %v1289 = vsub.f32 %v1277, %v1287
      %v1290 = vmul.f32 %v1288, %v1288
      %v1291 = vmul.f32 %v1289, %v1289
      %v1292 = vsel %vm775, %v1290, 0.0
      %1293 = vadd.xlane.f32.xlu0 %v1292
      %v1294 = vpop.xlane.xlu0 %1293
      %v1295 = vsel %vm775, %v1291, 0.0
      %1296 = vadd.xlane.f32.xlu0 %v1295
      %v1297 = vpop.xlane.xlu0 %1296
      %v1298 = vmul.f32 %v1294, %v1116
      %v1299 = vmul.f32 %v1297, %v1116
      %v1300 = vadd.f32 %v1298, 1e-12
      %v1301 = vadd.f32 %v1299, 1e-12
      %v1302 = vrsqrt.pop %v1300
      %v1303 = vmul.f32 %v1302, %v1300
      %v1304 = vmul.f32 %v1303, %v1302
      %v1305 = vmul.f32 0.5, %v1304
      %v1306 = vsub.f32 1.5, %v1305
      %v1307 = vmul.f32 %v1302, %v1306
      %vm1308 = vweird.f32 %v1300
      %vm1309 = vweird.f32 %v1302
      %vm1310 = vmor %vm1308, %vm1309
      %v1311 = vsel %vm1310, %v1302, %v1307
      %v1312 = vrsqrt.pop %v1301
      %v1313 = vmul.f32 %v1312, %v1301
      %v1314 = vmul.f32 %v1313, %v1312
      %v1315 = vmul.f32 0.5, %v1314
      %v1316 = vsub.f32 1.5, %v1315
      %v1317 = vmul.f32 %v1312, %v1316
      %vm1318 = vweird.f32 %v1301
      %vm1319 = vweird.f32 %v1312
      %vm1320 = vmor %vm1318, %vm1319
      %v1321 = vsel %vm1320, %v1312, %v1317
      %v1322 = vmul.f32 %v1288, %v1311
      %v1323 = vmul.f32 %v1289, %v1321
      %v1325 = vperm.slane %v1278, 0
      %v1327 = vmul.f32 %v1322, %v1325
      %v1328 = vmul.f32 %v1323, %v1325
      %v1330 = vperm.slane %v1279, 0
      %v1332 = vadd.f32 %v1327, %v1330
      %v1333 = vadd.f32 %v1328, %v1330
      %1334 = vst.msk [vmem:[#allocation2] sm:$0xff] %vm775, %v1332
      %1335 = vst.msk [vmem:[#allocation2 + $0x8] sm:$0xff] %vm775, %v1333
      %1336 = vst.msk [vmem:[%s16] sm:$0xff] %vm775, %v1332
      %1337 = vst.msk [vmem:[%s16 + $0x8] sm:$0xff] %vm775, %v1333
      // Predicated region
      $region89: #{bert_wrapper_forward.2} parent=83 // pred_check
        %p1338 = pneg %p436
      $region90: #{bert_wrapper_forward.2} parent=83 // pred_check_branch
        %1340 = sbr.rel (%p1338) target = $region92
      $region91: #{bert_wrapper_forward.2} parent=83 // pred_region
        _
      $region92: #{bert_wrapper_forward.2} parent=83 // pred_fallthru
        _
      // Predicated region
      $region93: #{bert_wrapper_forward.2} parent=83 // pred_check
        %p1341 = pneg %p436
      $region94: #{bert_wrapper_forward.2} parent=83 // pred_check_branch
        %1343 = sbr.rel (%p1341) target = $region96
      $region95: #{bert_wrapper_forward.2} parent=83 // pred_region
        _
      $region96: #{bert_wrapper_forward.2} parent=83 // pred_fallthru
        _
    $region84: #{bert_wrapper_forward.2} parent=5 // pred_fallthru
      _
    %p1344 = scmp.le.s32.totalorder 2, %s22
    // Predicated region
    $region97: #{bert_wrapper_forward.2} parent=5 // pred_check
      %p1345 = pneg %p1344
    $region98: #{bert_wrapper_forward.2} parent=5 // pred_check_branch
      %1347 = sbr.rel (%p1345) target = $region100
    $region99: #{bert_wrapper_forward.2} parent=5 // pred_region
      %s1348 = ssub.s32 %s22, 2
    $region100: #{bert_wrapper_forward.2} parent=5 // pred_fallthru
      _
  $region6: #{bert_wrapper_forward.2} parent=0 // loop_footer
    %s26 = sadd.s32 1, %s22
  $region7: #{bert_wrapper_forward.2} parent=0 // loop_footer_branch
    %21 = sbr.rel target = $region3
  $region8: #{bert_wrapper_forward.2} parent=0 // loop_exit
    _

</llo_original>
